<compile_context>
chip_gen: v7x
topology: tpu7x:2x2x1
jax: 0.10.0
libtpu: 0.0.40
codegen_flags: <defaults>
</compile_context>

<pallas_src>
import jax
import jax.numpy as jnp
import numpy as np
from jax.experimental import pallas as pl
from jax.experimental.pallas import tpu as pltpu


def _mha_kernel(q_ref, k_ref, v_ref, bias_ref, wq_ref, wk_ref, wv_ref,
                wo_ref, bo_ref, out_ref, attn_ref):
    """One batch element, all heads fused.

    q_ref/k_ref/v_ref : (1, H, L, Hd)   per-head input slabs
    bias_ref          : (1, 1, Lk)      additive mask bias (0 or -1e20)
    wq/wk/wv_ref      : (Hd, Hd)        pre-transposed; Wq^T pre-scaled
    wo_ref            : (H, Hd, D)      per-head row slabs of Wo^T
    bo_ref            : (1, D)
    out_ref           : (1, Lq, D)
    attn_ref          : (1, H, Lq, Lk)
    """
    _, H, Lq, Hd = q_ref.shape
    Lk = k_ref.shape[2]

    q = q_ref[0]                                   # (H, Lq, Hd)
    k = k_ref[0]                                   # (H, Lk, Hd)
    v = v_ref[0]                                   # (H, Lk, Hd)

    # Fused-head QKV projections: one (H*L, Hd) @ (Hd, Hd) matmul each.
    # Weights are already transposed (and Wq^T pre-scaled by 1/sqrt(D)).
    qp = jnp.dot(q.reshape(H * Lq, Hd), wq_ref[...],
                 preferred_element_type=jnp.float32).reshape(H, Lq, Hd)
    kp = jnp.dot(k.reshape(H * Lk, Hd), wk_ref[...],
                 preferred_element_type=jnp.float32).reshape(H, Lk, Hd)
    vp = jnp.dot(v.reshape(H * Lk, Hd), wv_ref[...],
                 preferred_element_type=jnp.float32).reshape(H, Lk, Hd)

    # energy (already scaled): head-batched contraction over Hd, no transpose.
    energy = jnp.einsum('hqd,hkd->hqk', qp, kp,
                        preferred_element_type=jnp.float32)       # (H, Lq, Lk)

    # additive mask bias precomputed in the wrapper: single VPU add.
    energy = energy + bias_ref[...]

    # softmax over keys (EUP exp + EUP approximate reciprocal).
    row_max = jnp.max(energy, axis=-1, keepdims=True)
    e = jnp.exp(energy - row_max)
    denom = jnp.sum(e, axis=-1, keepdims=True)
    attn = e * pl.reciprocal(denom, approx=True)                  # (H, Lq, Lk)
    attn_ref[0] = attn.astype(attn_ref.dtype)

    # context: head-batched (Lq, Lk) @ (Lk, Hd).
    ctx = jnp.einsum('hqk,hkd->hqd', attn, vp,
                     preferred_element_type=jnp.float32)          # (H, Lq, Hd)

    # fc_out: per-head (Lq, Hd) @ (Hd, D) summed over heads, + bias — all
    # inside this grid step (no cross-step accumulation on out_ref).
    partial = jnp.einsum('hqd,hde->hqe', ctx, wo_ref[...],
                         preferred_element_type=jnp.float32)      # (H, Lq, D)
    out = jnp.sum(partial, axis=0) + bo_ref[...]                  # (Lq, D)
    out_ref[0] = out.astype(out_ref.dtype)


def multi_head_attention(values, keys, query, mask, params, embed_dim, num_heads):
    """values/keys/query: (N, L, D); mask: (N, L). Returns (out, attention)."""
    N, Lq, D = query.shape
    Lk = keys.shape[1]
    H = num_heads
    Hd = D // H
    assert Hd * H == D
    assert values.shape[1] == Lk  # value_len must equal key_len

    # Glue (trace-time, free): per-head layout (N, H, L, Hd).
    q4 = query.reshape(N, Lq, H, Hd).transpose(0, 2, 1, 3)
    k4 = keys.reshape(N, Lk, H, Hd).transpose(0, 2, 1, 3)
    v4 = values.reshape(N, Lk, H, Hd).transpose(0, 2, 1, 3)

    # Additive mask bias (0 where attended, -1e20 where masked), built once.
    bias = jnp.where(mask == 0, jnp.float32(-1e20), jnp.float32(0.0))
    bias = bias.reshape(N, 1, Lk).astype(jnp.float32)

    # Pre-transposed weights; softmax scale 1/sqrt(embed_dim) folded into Wq^T.
    inv_scale = 1.0 / (float(embed_dim) ** 0.5)
    wqT = (params["wq"].T * inv_scale).astype(jnp.float32)        # (Hd, Hd)
    wkT = params["wk"].T.astype(jnp.float32)                      # (Hd, Hd)
    wvT = params["wv"].T.astype(jnp.float32)                      # (Hd, Hd)
    # fc_out: out = concat_h(ctx_h) @ Wo^T + b  ==  sum_h ctx_h @ Wo^T[h*Hd:(h+1)*Hd, :]
    woT = params["wo"].T.reshape(H, Hd, D).astype(jnp.float32)    # (H, Hd, D)
    bo = params["bo"].reshape(1, D).astype(jnp.float32)           # (1, D)

    out, attn = pl.pallas_call(
        _mha_kernel,
        out_shape=(
            jax.ShapeDtypeStruct((N, Lq, D), jnp.float32),
            jax.ShapeDtypeStruct((N, H, Lq, Lk), jnp.float32),
        ),
        grid=(N,),
        in_specs=[
            pl.BlockSpec((1, H, Lq, Hd), lambda n: (n, 0, 0, 0)),  # q
            pl.BlockSpec((1, H, Lk, Hd), lambda n: (n, 0, 0, 0)),  # k
            pl.BlockSpec((1, H, Lk, Hd), lambda n: (n, 0, 0, 0)),  # v
            pl.BlockSpec((1, 1, Lk), lambda n: (n, 0, 0)),         # mask bias
            pl.BlockSpec((Hd, Hd), lambda n: (0, 0)),              # Wq^T (scaled)
            pl.BlockSpec((Hd, Hd), lambda n: (0, 0)),              # Wk^T
            pl.BlockSpec((Hd, Hd), lambda n: (0, 0)),              # Wv^T
            pl.BlockSpec((H, Hd, D), lambda n: (0, 0, 0)),         # Wo^T slabs
            pl.BlockSpec((1, D), lambda n: (0, 0)),                # bias
        ],
        out_specs=(
            pl.BlockSpec((1, Lq, D), lambda n: (n, 0, 0)),         # out
            pl.BlockSpec((1, H, Lq, Lk), lambda n: (n, 0, 0, 0)),  # attention
        ),
        compiler_params=pltpu.CompilerParams(
            dimension_semantics=("parallel",)),
    )(q4, k4, v4, bias, wqT, wkT, wvT, woT, bo)

    return out, attn


def _reference(values, keys, query, mask, params, embed_dim, num_heads):
    """Pure-JAX mirror of the PyTorch forward for verification."""
    N, Lq, D = query.shape
    Lk = keys.shape[1]
    H = num_heads
    Hd = D // H
    v = values.reshape(N, Lk, H, Hd) @ params["wv"].T
    k = keys.reshape(N, Lk, H, Hd) @ params["wk"].T
    q = query.reshape(N, Lq, H, Hd) @ params["wq"].T
    energy = jnp.einsum("nqhd,nkhd->nhqk", q, k)
    energy = jnp.where(mask[:, None, None, :] == 0, -1e20, energy)
    attn = jax.nn.softmax(energy / (embed_dim ** 0.5), axis=3)
    out = jnp.einsum("nhql,nlhd->nqhd", attn, v).reshape(N, Lq, D)
    out = out @ params["wo"].T + params["bo"]
    return out, attn


if __name__ == "__main__":
    N, L, D, H = 2, 8, 32, 4
    Hd = D // H

    key = jax.random.PRNGKey(0)
    k1, k2, k3, k4, k5, k6, k7, k8, k9 = jax.random.split(key, 9)

    values = jax.random.normal(k1, (N, L, D), dtype=jnp.float32)
    keys_in = jax.random.normal(k2, (N, L, D), dtype=jnp.float32)
    query = jax.random.normal(k3, (N, L, D), dtype=jnp.float32)
    mask = (jax.random.uniform(k4, (N, L)) > 0.3).astype(jnp.float32)
    mask = mask.at[:, 0].set(1.0)  # guarantee at least one attended key per row

    params = {
        "wq": jax.random.normal(k5, (Hd, Hd), dtype=jnp.float32) * 0.1,
        "wk": jax.random.normal(k6, (Hd, Hd), dtype=jnp.float32) * 0.1,
        "wv": jax.random.normal(k7, (Hd, Hd), dtype=jnp.float32) * 0.1,
        "wo": jax.random.normal(k8, (D, D), dtype=jnp.float32) * 0.1,
        "bo": jax.random.normal(k9, (D,), dtype=jnp.float32) * 0.1,
    }

    out, attn = multi_head_attention(values, keys_in, query, mask, params, D, H)
    out = jax.block_until_ready(out)
    attn = jax.block_until_ready(attn)

    ref_out, ref_attn = _reference(values, keys_in, query, mask, params, D, H)
    # Tolerance loosened from 1e-5 solely because the kernel uses the EUP
    # approximate reciprocal (~2^-12 relative error) for the softmax denom;
    # any structural error would still exceed this by orders of magnitude.
    np.testing.assert_allclose(np.asarray(attn), np.asarray(ref_attn),
                               rtol=5e-3, atol=5e-3)
    np.testing.assert_allclose(np.asarray(out), np.asarray(ref_out),
                               rtol=5e-3, atol=5e-3)

    print("KERNEL_OK")
</pallas_src>

<mosaic_0001>
module attributes {stable_mosaic.version = 11 : i64} {
  func.func @_mha_kernel(%arg0: i32, %arg1: memref<1x4x8x8xf32, #tpu.memory_space<vmem>>, %arg2: memref<1x4x8x8xf32, #tpu.memory_space<vmem>>, %arg3: memref<1x4x8x8xf32, #tpu.memory_space<vmem>>, %arg4: memref<1x1x8xf32, #tpu.memory_space<vmem>>, %arg5: memref<8x8xf32, #tpu.memory_space<vmem>>, %arg6: memref<8x8xf32, #tpu.memory_space<vmem>>, %arg7: memref<8x8xf32, #tpu.memory_space<vmem>>, %arg8: memref<4x8x32xf32, #tpu.memory_space<vmem>>, %arg9: memref<1x32xf32, #tpu.memory_space<vmem>>, %arg10: memref<1x8x32xf32, #tpu.memory_space<vmem>>, %arg11: memref<1x4x8x8xf32, #tpu.memory_space<vmem>>) attributes {dimension_semantics = [#tpu.dimension_semantics<parallel>], iteration_bounds = array<i64: 2>, scalar_prefetch = 0 : i64, scratch_operands = 0 : i64, tpu.core_type = #tpu.core_type<tc>, window_params = [{transform_indices = @transform_0, window_bounds = array<i64: 1, 4, 8, 8>}, {transform_indices = @transform_1, window_bounds = array<i64: 1, 4, 8, 8>}, {transform_indices = @transform_2, window_bounds = array<i64: 1, 4, 8, 8>}, {transform_indices = @transform_3, window_bounds = array<i64: 1, 1, 8>}, {pipeline_mode = #tpu.pipeline_mode<synchronous>, transform_indices = @transform_4, window_bounds = array<i64: 8, 8>}, {pipeline_mode = #tpu.pipeline_mode<synchronous>, transform_indices = @transform_5, window_bounds = array<i64: 8, 8>}, {pipeline_mode = #tpu.pipeline_mode<synchronous>, transform_indices = @transform_6, window_bounds = array<i64: 8, 8>}, {pipeline_mode = #tpu.pipeline_mode<synchronous>, transform_indices = @transform_7, window_bounds = array<i64: 4, 8, 32>}, {pipeline_mode = #tpu.pipeline_mode<synchronous>, transform_indices = @transform_8, window_bounds = array<i64: 1, 32>}, {transform_indices = @transform_9, window_bounds = array<i64: 1, 8, 32>}, {transform_indices = @transform_10, window_bounds = array<i64: 1, 4, 8, 8>}]} {
    %c0 = arith.constant 0 : index
    %c0_0 = arith.constant 0 : index
    %c0_1 = arith.constant 0 : index
    %c0_2 = arith.constant 0 : index
    %0 = vector.load %arg1[%c0, %c0_0, %c0_1, %c0_2] : memref<1x4x8x8xf32, #tpu.memory_space<vmem>>, vector<1x4x8x8xf32>
    %1 = vector.shape_cast %0 : vector<1x4x8x8xf32> to vector<4x8x8xf32>
    %c0_3 = arith.constant 0 : index
    %c0_4 = arith.constant 0 : index
    %c0_5 = arith.constant 0 : index
    %c0_6 = arith.constant 0 : index
    %2 = vector.load %arg2[%c0_3, %c0_4, %c0_5, %c0_6] : memref<1x4x8x8xf32, #tpu.memory_space<vmem>>, vector<1x4x8x8xf32>
    %3 = vector.shape_cast %2 : vector<1x4x8x8xf32> to vector<4x8x8xf32>
    %c0_7 = arith.constant 0 : index
    %c0_8 = arith.constant 0 : index
    %c0_9 = arith.constant 0 : index
    %c0_10 = arith.constant 0 : index
    %4 = vector.load %arg3[%c0_7, %c0_8, %c0_9, %c0_10] : memref<1x4x8x8xf32, #tpu.memory_space<vmem>>, vector<1x4x8x8xf32>
    %5 = vector.shape_cast %4 : vector<1x4x8x8xf32> to vector<4x8x8xf32>
    %6 = vector.shape_cast %1 : vector<4x8x8xf32> to vector<32x8xf32>
    %c0_11 = arith.constant 0 : index
    %c0_12 = arith.constant 0 : index
    %7 = vector.load %arg5[%c0_11, %c0_12] : memref<8x8xf32, #tpu.memory_space<vmem>>, vector<8x8xf32>
    %cst = arith.constant dense<0.000000e+00> : vector<32x8xf32>
    %8 = tpu.matmul %6, %7, %cst {dimension_numbers = #tpu.dot_dimension_numbers<[1], [0], [0], [1], [0, 0, 1, 1], [], []>} : vector<32x8xf32>, vector<8x8xf32>, vector<32x8xf32> -> vector<32x8xf32>
    %9 = vector.shape_cast %8 : vector<32x8xf32> to vector<4x8x8xf32>
    %10 = vector.shape_cast %3 : vector<4x8x8xf32> to vector<32x8xf32>
    %c0_13 = arith.constant 0 : index
    %c0_14 = arith.constant 0 : index
    %11 = vector.load %arg6[%c0_13, %c0_14] : memref<8x8xf32, #tpu.memory_space<vmem>>, vector<8x8xf32>
    %cst_15 = arith.constant dense<0.000000e+00> : vector<32x8xf32>
    %12 = tpu.matmul %10, %11, %cst_15 {dimension_numbers = #tpu.dot_dimension_numbers<[1], [0], [0], [1], [0, 0, 1, 1], [], []>} : vector<32x8xf32>, vector<8x8xf32>, vector<32x8xf32> -> vector<32x8xf32>
    %13 = vector.shape_cast %12 : vector<32x8xf32> to vector<4x8x8xf32>
    %14 = vector.shape_cast %5 : vector<4x8x8xf32> to vector<32x8xf32>
    %c0_16 = arith.constant 0 : index
    %c0_17 = arith.constant 0 : index
    %15 = vector.load %arg7[%c0_16, %c0_17] : memref<8x8xf32, #tpu.memory_space<vmem>>, vector<8x8xf32>
    %cst_18 = arith.constant dense<0.000000e+00> : vector<32x8xf32>
    %16 = tpu.matmul %14, %15, %cst_18 {dimension_numbers = #tpu.dot_dimension_numbers<[1], [0], [0], [1], [0, 0, 1, 1], [], []>} : vector<32x8xf32>, vector<8x8xf32>, vector<32x8xf32> -> vector<32x8xf32>
    %17 = vector.shape_cast %16 : vector<32x8xf32> to vector<4x8x8xf32>
    "tpu.trace_start"() <{level = 10 : i32, message = "hqd,hkd->hqk"}> : () -> ()
    %cst_19 = arith.constant dense<0.000000e+00> : vector<4x8x8xf32>
    %18 = tpu.matmul %9, %13, %cst_19 {dimension_numbers = #tpu.dot_dimension_numbers<[2], [2], [1], [1], [0, 0, 0, 1, 1, 1], [0], [0]>} : vector<4x8x8xf32>, vector<4x8x8xf32>, vector<4x8x8xf32> -> vector<4x8x8xf32>
    "tpu.trace_stop"() : () -> ()
    %c0_20 = arith.constant 0 : index
    %c0_21 = arith.constant 0 : index
    %c0_22 = arith.constant 0 : index
    %19 = vector.load %arg4[%c0_20, %c0_21, %c0_22] : memref<1x1x8xf32, #tpu.memory_space<vmem>>, vector<1x1x8xf32>
    %20 = vector.broadcast %19 : vector<1x1x8xf32> to vector<4x8x8xf32>
    %21 = arith.addf %18, %20 : vector<4x8x8xf32>
    %cst_23 = arith.constant dense<0xFF800000> : vector<4x8xf32>
    %22 = vector.multi_reduction <maximumf>, %21, %cst_23 [2] : vector<4x8x8xf32> to vector<4x8xf32>
    %23 = vector.shape_cast %22 : vector<4x8xf32> to vector<4x8x1xf32>
    %24 = vector.broadcast %23 : vector<4x8x1xf32> to vector<4x8x8xf32>
    %25 = arith.subf %21, %24 : vector<4x8x8xf32>
    %26 = math.exp %25 : vector<4x8x8xf32>
    %cst_24 = arith.constant dense<0.000000e+00> : vector<4x8xf32>
    %27 = vector.multi_reduction <add>, %26, %cst_24 [2] : vector<4x8x8xf32> to vector<4x8xf32>
    %28 = vector.shape_cast %27 : vector<4x8xf32> to vector<4x8x1xf32>
    %29 = tpu.reciprocal %28 {approx = true} : vector<4x8x1xf32> -> vector<4x8x1xf32>
    %30 = vector.broadcast %29 : vector<4x8x1xf32> to vector<4x8x8xf32>
    %31 = arith.mulf %26, %30 : vector<4x8x8xf32>
    %c0_25 = arith.constant 0 : index
    %c0_26 = arith.constant 0 : index
    %c0_27 = arith.constant 0 : index
    %c0_28 = arith.constant 0 : index
    %32 = vector.load %arg11[%c0_25, %c0_26, %c0_27, %c0_28] : memref<1x4x8x8xf32, #tpu.memory_space<vmem>>, vector<1x4x8x8xf32>
    %33 = vector.shape_cast %32 : vector<1x4x8x8xf32> to vector<4x8x8xf32>
    %34 = vector.shape_cast %31 : vector<4x8x8xf32> to vector<1x4x8x8xf32>
    tpu.vector_store %arg11[%c0_25, %c0_26, %c0_27, %c0_28], %34 {strides = array<i32>} : memref<1x4x8x8xf32, #tpu.memory_space<vmem>>, vector<1x4x8x8xf32>,
    "tpu.trace_start"() <{level = 10 : i32, message = "hqk,hkd->hqd"}> : () -> ()
    %cst_29 = arith.constant dense<0.000000e+00> : vector<4x8x8xf32>
    %35 = tpu.matmul %31, %17, %cst_29 {dimension_numbers = #tpu.dot_dimension_numbers<[2], [1], [1], [2], [0, 0, 0, 1, 1, 2], [0], [0]>} : vector<4x8x8xf32>, vector<4x8x8xf32>, vector<4x8x8xf32> -> vector<4x8x8xf32>
    "tpu.trace_stop"() : () -> ()
    %c0_30 = arith.constant 0 : index
    %c0_31 = arith.constant 0 : index
    %c0_32 = arith.constant 0 : index
    %36 = vector.load %arg8[%c0_30, %c0_31, %c0_32] : memref<4x8x32xf32, #tpu.memory_space<vmem>>, vector<4x8x32xf32>
    "tpu.trace_start"() <{level = 10 : i32, message = "hqd,hde->hqe"}> : () -> ()
    %cst_33 = arith.constant dense<0.000000e+00> : vector<4x8x32xf32>
    %37 = tpu.matmul %35, %36, %cst_33 {dimension_numbers = #tpu.dot_dimension_numbers<[2], [1], [1], [2], [0, 0, 0, 1, 1, 2], [0], [0]>} : vector<4x8x8xf32>, vector<4x8x32xf32>, vector<4x8x32xf32> -> vector<4x8x32xf32>
    "tpu.trace_stop"() : () -> ()
    %cst_34 = arith.constant dense<0.000000e+00> : vector<8x32xf32>
    %38 = vector.multi_reduction <add>, %37, %cst_34 [0] : vector<4x8x32xf32> to vector<8x32xf32>
    %c0_35 = arith.constant 0 : index
    %c0_36 = arith.constant 0 : index
    %39 = vector.load %arg9[%c0_35, %c0_36] : memref<1x32xf32, #tpu.memory_space<vmem>>, vector<1x32xf32>
    %40 = vector.broadcast %39 : vector<1x32xf32> to vector<8x32xf32>
    %41 = arith.addf %38, %40 : vector<8x32xf32>
    %c0_37 = arith.constant 0 : index
    %c0_38 = arith.constant 0 : index
    %c0_39 = arith.constant 0 : index
    %42 = vector.load %arg10[%c0_37, %c0_38, %c0_39] : memref<1x8x32xf32, #tpu.memory_space<vmem>>, vector<1x8x32xf32>
    %43 = vector.shape_cast %42 : vector<1x8x32xf32> to vector<8x32xf32>
    %44 = vector.shape_cast %41 : vector<8x32xf32> to vector<1x8x32xf32>
    tpu.vector_store %arg10[%c0_37, %c0_38, %c0_39], %44 {strides = array<i32>} : memref<1x8x32xf32, #tpu.memory_space<vmem>>, vector<1x8x32xf32>,
    return
  }
  func.func @transform_0(%arg0: i32) -> (i32, i32, i32, i32) {
    %c0_i32 = arith.constant 0 : i32
    %c0_i32_0 = arith.constant 0 : i32
    %c0_i32_1 = arith.constant 0 : i32
    %c0_i32_2 = arith.constant 0 : i32
    return %arg0, %c0_i32, %c0_i32_0, %c0_i32_1 : i32, i32, i32, i32
  }
  func.func @transform_1(%arg0: i32) -> (i32, i32, i32, i32) {
    %c0_i32 = arith.constant 0 : i32
    %c0_i32_0 = arith.constant 0 : i32
    %c0_i32_1 = arith.constant 0 : i32
    %c0_i32_2 = arith.constant 0 : i32
    return %arg0, %c0_i32, %c0_i32_0, %c0_i32_1 : i32, i32, i32, i32
  }
  func.func @transform_2(%arg0: i32) -> (i32, i32, i32, i32) {
    %c0_i32 = arith.constant 0 : i32
    %c0_i32_0 = arith.constant 0 : i32
    %c0_i32_1 = arith.constant 0 : i32
    %c0_i32_2 = arith.constant 0 : i32
    return %arg0, %c0_i32, %c0_i32_0, %c0_i32_1 : i32, i32, i32, i32
  }
  func.func @transform_3(%arg0: i32) -> (i32, i32, i32) {
    %c0_i32 = arith.constant 0 : i32
    %c0_i32_0 = arith.constant 0 : i32
    %c0_i32_1 = arith.constant 0 : i32
    return %arg0, %c0_i32, %c0_i32_0 : i32, i32, i32
  }
  func.func @transform_4(%arg0: i32) -> (i32, i32) {
    %c0_i32 = arith.constant 0 : i32
    %c0_i32_0 = arith.constant 0 : i32
    %c0_i32_1 = arith.constant 0 : i32
    return %c0_i32, %c0_i32_0 : i32, i32
  }
  func.func @transform_5(%arg0: i32) -> (i32, i32) {
    %c0_i32 = arith.constant 0 : i32
    %c0_i32_0 = arith.constant 0 : i32
    %c0_i32_1 = arith.constant 0 : i32
    return %c0_i32, %c0_i32_0 : i32, i32
  }
  func.func @transform_6(%arg0: i32) -> (i32, i32) {
    %c0_i32 = arith.constant 0 : i32
    %c0_i32_0 = arith.constant 0 : i32
    %c0_i32_1 = arith.constant 0 : i32
    return %c0_i32, %c0_i32_0 : i32, i32
  }
  func.func @transform_7(%arg0: i32) -> (i32, i32, i32) {
    %c0_i32 = arith.constant 0 : i32
    %c0_i32_0 = arith.constant 0 : i32
    %c0_i32_1 = arith.constant 0 : i32
    %c0_i32_2 = arith.constant 0 : i32
    return %c0_i32, %c0_i32_0, %c0_i32_1 : i32, i32, i32
  }
  func.func @transform_8(%arg0: i32) -> (i32, i32) {
    %c0_i32 = arith.constant 0 : i32
    %c0_i32_0 = arith.constant 0 : i32
    %c0_i32_1 = arith.constant 0 : i32
    return %c0_i32, %c0_i32_0 : i32, i32
  }
  func.func @transform_9(%arg0: i32) -> (i32, i32, i32) {
    %c0_i32 = arith.constant 0 : i32
    %c0_i32_0 = arith.constant 0 : i32
    %c0_i32_1 = arith.constant 0 : i32
    return %arg0, %c0_i32, %c0_i32_0 : i32, i32, i32
  }
  func.func @transform_10(%arg0: i32) -> (i32, i32, i32, i32) {
    %c0_i32 = arith.constant 0 : i32
    %c0_i32_0 = arith.constant 0 : i32
    %c0_i32_1 = arith.constant 0 : i32
    %c0_i32_2 = arith.constant 0 : i32
    return %arg0, %c0_i32, %c0_i32_0, %c0_i32_1 : i32, i32, i32, i32
  }
}

</mosaic_0001>

<llo_original>
// kernel: tpu_custom_call.1
$region0: #{tpu_custom_call.1}
  #allocation0 [shape = 'u32[]', space=smem, size = 0x4, offset = 0x4, fixed_abs, tag = 'smem constant byte address 0x4 - core index']
  #allocation1 [shape = 'u32[144,128]{1,0:T(1,128)}', space=vmem, size = 0x12000, scoped, tag = 'internal scratch']
  %s0 = inlined_call_operand.hbm [shape: f32[2,4,8,8], index: 0, kind: input, shape index: {}]
  %s1 = inlined_call_operand.hbm [shape: f32[2,4,8,8], index: 1, kind: input, shape index: {}]
  %s2 = inlined_call_operand.hbm [shape: f32[2,4,8,8], index: 2, kind: input, shape index: {}]
  %s3 = inlined_call_operand.vmem [shape: f32[2,1,8], index: 3, kind: input, shape index: {}]
  %s4 = inlined_call_operand.vmem [shape: f32[8,8], index: 4, kind: input, shape index: {}]
  %s5 = inlined_call_operand.vmem [shape: f32[8,8], index: 5, kind: input, shape index: {}]
  %s6 = inlined_call_operand.hbm [shape: f32[8,8], index: 6, kind: input, shape index: {}]
  %s7 = inlined_call_operand.hbm [shape: f32[4,8,32], index: 7, kind: input, shape index: {}]
  %s8 = inlined_call_operand.vmem [shape: f32[1,32], index: 8, kind: input, shape index: {}]
  %s9 = inlined_call_operand.hbm [shape: f32[2,8,32], index: 9, kind: output, shape index: {0}]
  %s10 = inlined_call_operand.hbm [shape: f32[2,4,8,8], index: 10, kind: output, shape index: {1}]
  %11 = xla_tuple %s9, %s10
  %s12 = sld [smem:[#allocation0]]
  $region97: #{tpu_custom_call.1} parent=0
    _
  %s14 = ssub.s32 1, %s12
  %s15 = scalar_select 0, %s14, %s12
  $region1: #{tpu_custom_call.1} parent=0
    #allocation2 [shape = 'u8[32768]{0}', space=vmem, size = 0x8000, scoped, tag = 'input window, operand 0']
    #allocation3 [shape = 's32[2]{0}', space=sflag, size = 0x8, scoped, tag = 'scoped memory for tpu_custom_call.1']
    #allocation4 [shape = 's32[2]{0}', space=sflag, size = 0x8, scoped, tag = 'scoped memory for tpu_custom_call.1']
    #allocation5 [shape = 'u8[32768]{0}', space=vmem, size = 0x8000, scoped, tag = 'input window, operand 1']
    #allocation6 [shape = 's32[2]{0}', space=sflag, size = 0x8, scoped, tag = 'scoped memory for tpu_custom_call.1']
    #allocation7 [shape = 'u8[32768]{0}', space=vmem, size = 0x8000, scoped, tag = 'input window, operand 2']
    #allocation8 [shape = 'u8[4096]{0}', space=vmem, size = 0x1000, scoped, tag = 'input window, operand 6, single buffered']
    #allocation9 [shape = 's32[1]{0}', space=sflag, size = 0x4, scoped, tag = 'scoped memory for tpu_custom_call.1']
    #allocation10 [shape = 'u8[16384]{0}', space=vmem, size = 0x4000, scoped, tag = 'input window, operand 7, single buffered']
    #allocation11 [shape = 'u8[8192]{0}', space=vmem, size = 0x2000, scoped, tag = 'output window, operand 0']
    #allocation12 [shape = 'u8[32768]{0}', space=vmem, size = 0x8000, scoped, tag = 'output window, operand 1']
    #allocation13 [shape = 's32[2]{0}', space=sflag, size = 0x8, scoped, tag = 'scoped memory for tpu_custom_call.1']
    %16 = vsyncpa [#allocation3], 0
    %s17 = scalar_lea.sflag [#allocation3], 1
    %18 = vsyncpa %s17, 0
    %19 = vsyncpa [#allocation6], 0
    %s20 = scalar_lea.sflag [#allocation6], 1
    %21 = vsyncpa %s20, 0
    %22 = vsyncpa [#allocation9], 0
    %23 = vsyncpa [#allocation4], 0
    %s24 = scalar_lea.sflag [#allocation4], 1
    %25 = vsyncpa %s24, 0
    %26 = vsyncpa [#allocation13], 0
    %s27 = scalar_lea.sflag [#allocation13], 1
    %28 = vsyncpa %s27, 0
    loop: start=0, step=1, limit=4
    $region2: #{tpu_custom_call.1} parent=1 // loop_pre_header
      _
    $region3: #{tpu_custom_call.1} parent=1 // loop_header
      %s30 = sphi 0, %s34
      %p31 = scmp.ge.s32.totalorder %s30, 4
      %s40 = sphi 0, %s42
      %s43 = sphi 0, %s40
      %s44 = sphi 0, %s43
      %s60 = sphi 0, %s44
      %s66 = sphi 0, %s68
      %s69 = sphi 0, %s66
      %s70 = sphi 0, %s69
      %s86 = sphi 0, %s70
      %s92 = sphi 0, %s94
      %s95 = sphi 0, %s92
      %s96 = sphi 0, %s95
      %s112 = sphi 0, %s96
      %s118 = sphi 0, %s120
      %s121 = sphi 0, %s118
      %s122 = sphi 0, %s121
      %s138 = sphi 0, %s122
      %s142 = sphi 0, %s142
      %s144 = sphi 0, %s142
      %s145 = sphi 0, %s144
      %s159 = sphi 0, %s145
      %s163 = sphi 0, %s163
      %s165 = sphi 0, %s163
      %s166 = sphi 0, %s165
      %s180 = sphi 0, %s166
      %s184 = sphi 0, %s184
      %s186 = sphi 0, %s184
      %s187 = sphi 0, %s186
      %s201 = sphi 0, %s187
      %s205 = sphi 0, %s205
      %s207 = sphi 0, %s205
      %s208 = sphi 0, %s207
      %s222 = sphi 0, %s208
      %s226 = sphi 0, %s226
      %s228 = sphi 0, %s226
      %s229 = sphi 0, %s228
      %s243 = sphi 0, %s229
      %s249 = sphi 0, %s251
      %s252 = sphi 0, %s249
      %s253 = sphi 0, %s252
      %s269 = sphi 0, %s253
      %s275 = sphi 0, %s277
      %s278 = sphi 0, %s275
      %s279 = sphi 0, %s278
      %s295 = sphi 0, %s279
    $region4: #{tpu_custom_call.1} parent=1 // loop_header_branch
      %33 = sbr.rel (%p31) target = $region8
    $region5: #{tpu_custom_call.1} parent=1 // loop_body
      %s35 = ssub.s32 %s30, 1
      %s36 = ssub.s32 %s30, 2
      %s37 = sadd.s32 %s30, 1
      %s38 = ssub.s32 %s30, %s37
      %p39 = scmp.eq.s32.totalorder %s38, 0
      %s41 = sadd.s32 %s40, 1
      %s42 = scalar_select %p39, %s40, %s41
      %p45 = pneg %p39
      %p46 = scmp.eq.s32.totalorder %s30, 1
      %p47 = por %p45, %p46
      %p48 = scmp.ne.s32.totalorder %s40, %s43
      %p49 = scmp.eq.s32.totalorder %s30, 0
      %p50 = por %p48, %p49
      %p51 = scmp.ne.s32.totalorder %s40, %s43
      %p52 = scmp.eq.s32.totalorder %s35, 1
      %p53 = por %p51, %p52
      %p54 = scmp.ne.s32.totalorder %s43, %s44
      %p55 = scmp.eq.s32.totalorder %s35, 0
      %p56 = por %p54, %p55
      %p57 = scmp.ne.s32.totalorder %s43, %s44
      %p58 = scmp.eq.s32.totalorder %s36, 1
      %p59 = por %p57, %p58
      %p61 = scmp.ne.s32.totalorder %s44, %s60
      %p62 = scmp.eq.s32.totalorder %s36, 0
      %p63 = por %p61, %p62
      %s64 = ssub.s32 %s30, %s37
      %p65 = scmp.eq.s32.totalorder %s64, 0
      %s67 = sadd.s32 %s66, 1
      %s68 = scalar_select %p65, %s66, %s67
      %p71 = pneg %p65
      %p72 = scmp.eq.s32.totalorder %s30, 1
      %p73 = por %p71, %p72
      %p74 = scmp.ne.s32.totalorder %s66, %s69
      %p75 = scmp.eq.s32.totalorder %s30, 0
      %p76 = por %p74, %p75
      %p77 = scmp.ne.s32.totalorder %s66, %s69
      %p78 = scmp.eq.s32.totalorder %s35, 1
      %p79 = por %p77, %p78
      %p80 = scmp.ne.s32.totalorder %s69, %s70
      %p81 = scmp.eq.s32.totalorder %s35, 0
      %p82 = por %p80, %p81
      %p83 = scmp.ne.s32.totalorder %s69, %s70
      %p84 = scmp.eq.s32.totalorder %s36, 1
      %p85 = por %p83, %p84
      %p87 = scmp.ne.s32.totalorder %s70, %s86
      %p88 = scmp.eq.s32.totalorder %s36, 0
      %p89 = por %p87, %p88
      %s90 = ssub.s32 %s30, %s37
      %p91 = scmp.eq.s32.totalorder %s90, 0
      %s93 = sadd.s32 %s92, 1
      %s94 = scalar_select %p91, %s92, %s93
      %p97 = pneg %p91
      %p98 = scmp.eq.s32.totalorder %s30, 1
      %p99 = por %p97, %p98
      %p100 = scmp.ne.s32.totalorder %s92, %s95
      %p101 = scmp.eq.s32.totalorder %s30, 0
      %p102 = por %p100, %p101
      %p103 = scmp.ne.s32.totalorder %s92, %s95
      %p104 = scmp.eq.s32.totalorder %s35, 1
      %p105 = por %p103, %p104
      %p106 = scmp.ne.s32.totalorder %s95, %s96
      %p107 = scmp.eq.s32.totalorder %s35, 0
      %p108 = por %p106, %p107
      %p109 = scmp.ne.s32.totalorder %s95, %s96
      %p110 = scmp.eq.s32.totalorder %s36, 1
      %p111 = por %p109, %p110
      %p113 = scmp.ne.s32.totalorder %s96, %s112
      %p114 = scmp.eq.s32.totalorder %s36, 0
      %p115 = por %p113, %p114
      %s116 = ssub.s32 %s30, %s37
      %p117 = scmp.eq.s32.totalorder %s116, 0
      %s119 = sadd.s32 %s118, 1
      %s120 = scalar_select %p117, %s118, %s119
      %p123 = pneg %p117
      %p124 = scmp.eq.s32.totalorder %s30, 1
      %p125 = por %p123, %p124
      %p126 = scmp.ne.s32.totalorder %s118, %s121
      %p127 = scmp.eq.s32.totalorder %s30, 0
      %p128 = por %p126, %p127
      %p129 = scmp.ne.s32.totalorder %s118, %s121
      %p130 = scmp.eq.s32.totalorder %s35, 1
      %p131 = por %p129, %p130
      %p132 = scmp.ne.s32.totalorder %s121, %s122
      %p133 = scmp.eq.s32.totalorder %s35, 0
      %p134 = por %p132, %p133
      %p135 = scmp.ne.s32.totalorder %s121, %s122
      %p136 = scmp.eq.s32.totalorder %s36, 1
      %p137 = por %p135, %p136
      %p139 = scmp.ne.s32.totalorder %s122, %s138
      %p140 = scmp.eq.s32.totalorder %s36, 0
      %p141 = por %p139, %p140
      %s143 = sadd.s32 %s142, 1
      %p146 = scmp.eq.s32.totalorder %s30, 1
      %p147 = scmp.ne.s32.totalorder %s142, %s144
      %p148 = scmp.eq.s32.totalorder %s30, 0
      %p149 = por %p147, %p148
      %p150 = scmp.ne.s32.totalorder %s142, %s144
      %p151 = scmp.eq.s32.totalorder %s35, 1
      %p152 = por %p150, %p151
      %p153 = scmp.ne.s32.totalorder %s144, %s145
      %p154 = scmp.eq.s32.totalorder %s35, 0
      %p155 = por %p153, %p154
      %p156 = scmp.ne.s32.totalorder %s144, %s145
      %p157 = scmp.eq.s32.totalorder %s36, 1
      %p158 = por %p156, %p157
      %p160 = scmp.ne.s32.totalorder %s145, %s159
      %p161 = scmp.eq.s32.totalorder %s36, 0
      %p162 = por %p160, %p161
      %s164 = sadd.s32 %s163, 1
      %p167 = scmp.eq.s32.totalorder %s30, 1
      %p168 = scmp.ne.s32.totalorder %s163, %s165
      %p169 = scmp.eq.s32.totalorder %s30, 0
      %p170 = por %p168, %p169
      %p171 = scmp.ne.s32.totalorder %s163, %s165
      %p172 = scmp.eq.s32.totalorder %s35, 1
      %p173 = por %p171, %p172
      %p174 = scmp.ne.s32.totalorder %s165, %s166
      %p175 = scmp.eq.s32.totalorder %s35, 0
      %p176 = por %p174, %p175
      %p177 = scmp.ne.s32.totalorder %s165, %s166
      %p178 = scmp.eq.s32.totalorder %s36, 1
      %p179 = por %p177, %p178
      %p181 = scmp.ne.s32.totalorder %s166, %s180
      %p182 = scmp.eq.s32.totalorder %s36, 0
      %p183 = por %p181, %p182
      %s185 = sadd.s32 %s184, 1
      %p188 = scmp.eq.s32.totalorder %s30, 1
      %p189 = scmp.ne.s32.totalorder %s184, %s186
      %p190 = scmp.eq.s32.totalorder %s30, 0
      %p191 = por %p189, %p190
      %p192 = scmp.ne.s32.totalorder %s184, %s186
      %p193 = scmp.eq.s32.totalorder %s35, 1
      %p194 = por %p192, %p193
      %p195 = scmp.ne.s32.totalorder %s186, %s187
      %p196 = scmp.eq.s32.totalorder %s35, 0
      %p197 = por %p195, %p196
      %p198 = scmp.ne.s32.totalorder %s186, %s187
      %p199 = scmp.eq.s32.totalorder %s36, 1
      %p200 = por %p198, %p199
      %p202 = scmp.ne.s32.totalorder %s187, %s201
      %p203 = scmp.eq.s32.totalorder %s36, 0
      %p204 = por %p202, %p203
      %s206 = sadd.s32 %s205, 1
      %p209 = scmp.eq.s32.totalorder %s30, 1
      %p210 = scmp.ne.s32.totalorder %s205, %s207
      %p211 = scmp.eq.s32.totalorder %s30, 0
      %p212 = por %p210, %p211
      %p213 = scmp.ne.s32.totalorder %s205, %s207
      %p214 = scmp.eq.s32.totalorder %s35, 1
      %p215 = por %p213, %p214
      %p216 = scmp.ne.s32.totalorder %s207, %s208
      %p217 = scmp.eq.s32.totalorder %s35, 0
      %p218 = por %p216, %p217
      %p219 = scmp.ne.s32.totalorder %s207, %s208
      %p220 = scmp.eq.s32.totalorder %s36, 1
      %p221 = por %p219, %p220
      %p223 = scmp.ne.s32.totalorder %s208, %s222
      %p224 = scmp.eq.s32.totalorder %s36, 0
      %p225 = por %p223, %p224
      %s227 = sadd.s32 %s226, 1
      %p230 = scmp.eq.s32.totalorder %s30, 1
      %p231 = scmp.ne.s32.totalorder %s226, %s228
      %p232 = scmp.eq.s32.totalorder %s30, 0
      %p233 = por %p231, %p232
      %p234 = scmp.ne.s32.totalorder %s226, %s228
      %p235 = scmp.eq.s32.totalorder %s35, 1
      %p236 = por %p234, %p235
      %p237 = scmp.ne.s32.totalorder %s228, %s229
      %p238 = scmp.eq.s32.totalorder %s35, 0
      %p239 = por %p237, %p238
      %p240 = scmp.ne.s32.totalorder %s228, %s229
      %p241 = scmp.eq.s32.totalorder %s36, 1
      %p242 = por %p240, %p241
      %p244 = scmp.ne.s32.totalorder %s229, %s243
      %p245 = scmp.eq.s32.totalorder %s36, 0
      %p246 = por %p244, %p245
      %s247 = ssub.s32 %s30, %s37
      %p248 = scmp.eq.s32.totalorder %s247, 0
      %s250 = sadd.s32 %s249, 1
      %s251 = scalar_select %p248, %s249, %s250
      %p254 = pneg %p248
      %p255 = scmp.eq.s32.totalorder %s30, 1
      %p256 = por %p254, %p255
      %p257 = scmp.ne.s32.totalorder %s249, %s252
      %p258 = scmp.eq.s32.totalorder %s30, 0
      %p259 = por %p257, %p258
      %p260 = scmp.ne.s32.totalorder %s249, %s252
      %p261 = scmp.eq.s32.totalorder %s35, 1
      %p262 = por %p260, %p261
      %p263 = scmp.ne.s32.totalorder %s252, %s253
      %p264 = scmp.eq.s32.totalorder %s35, 0
      %p265 = por %p263, %p264
      %p266 = scmp.ne.s32.totalorder %s252, %s253
      %p267 = scmp.eq.s32.totalorder %s36, 1
      %p268 = por %p266, %p267
      %p270 = scmp.ne.s32.totalorder %s253, %s269
      %p271 = scmp.eq.s32.totalorder %s36, 0
      %p272 = por %p270, %p271
      %s273 = ssub.s32 %s30, %s37
      %p274 = scmp.eq.s32.totalorder %s273, 0
      %s276 = sadd.s32 %s275, 1
      %s277 = scalar_select %p274, %s275, %s276
      %p280 = pneg %p274
      %p281 = scmp.eq.s32.totalorder %s30, 1
      %p282 = por %p280, %p281
      %p283 = scmp.ne.s32.totalorder %s275, %s278
      %p284 = scmp.eq.s32.totalorder %s30, 0
      %p285 = por %p283, %p284
      %p286 = scmp.ne.s32.totalorder %s275, %s278
      %p287 = scmp.eq.s32.totalorder %s35, 1
      %p288 = por %p286, %p287
      %p289 = scmp.ne.s32.totalorder %s278, %s279
      %p290 = scmp.eq.s32.totalorder %s35, 0
      %p291 = por %p289, %p290
      %p292 = scmp.ne.s32.totalorder %s278, %s279
      %p293 = scmp.eq.s32.totalorder %s36, 1
      %p294 = por %p292, %p293
      %p296 = scmp.ne.s32.totalorder %s279, %s295
      %p297 = scmp.eq.s32.totalorder %s36, 0
      %p298 = por %p296, %p297
      %p299 = scmp.le.s32.totalorder 1, %s30
      %p300 = scmp.lt.s32.totalorder %s30, 3
      %p301 = pnand %p299, %p300
      %p302 = pneg %p301
      // Predicated region
      $region9: #{tpu_custom_call.1} parent=5 // pred_check
        _
      $region10: #{tpu_custom_call.1} parent=5 // pred_check_branch
        %304 = sbr.rel (%p301) target = $region12
      $region11: #{tpu_custom_call.1} parent=5 // pred_region
        %s305 = ssub.s32 %s30, 1
        // Predicated region
        $region13: #{tpu_custom_call.1} parent=11 // pred_check
          %p306 = pneg %p155
        $region14: #{tpu_custom_call.1} parent=11 // pred_check_branch
          %308 = sbr.rel (%p306) target = $region16
        $region15: #{tpu_custom_call.1} parent=11 // pred_region
          _
        $region16: #{tpu_custom_call.1} parent=11 // pred_fallthru
          _
        // Predicated region
        $region17: #{tpu_custom_call.1} parent=11 // pred_check
          %p309 = pneg %p176
        $region18: #{tpu_custom_call.1} parent=11 // pred_check_branch
          %311 = sbr.rel (%p309) target = $region20
        $region19: #{tpu_custom_call.1} parent=11 // pred_region
          _
        $region20: #{tpu_custom_call.1} parent=11 // pred_fallthru
          _
        // Predicated region
        $region21: #{tpu_custom_call.1} parent=11 // pred_check
          %p312 = pneg %p197
        $region22: #{tpu_custom_call.1} parent=11 // pred_check_branch
          %314 = sbr.rel (%p312) target = $region24
        $region23: #{tpu_custom_call.1} parent=11 // pred_region
          %s316 = ssub.s32 128, 128
          %317 = vsyncadd [#allocation9], %s316
          %s319 = sshll.u32 [#allocation8], 4
          %s320 = int_to_ptr.vmem [resolvable:$true] %s319
          %322 = dma.hbm_to_vmem [thread:$0]  %s6, 128, %s320, [#allocation9]
        $region24: #{tpu_custom_call.1} parent=11 // pred_fallthru
          _
        // Predicated region
        $region25: #{tpu_custom_call.1} parent=11 // pred_check
          %p323 = pneg %p218
        $region26: #{tpu_custom_call.1} parent=11 // pred_check_branch
          %325 = sbr.rel (%p323) target = $region28
        $region27: #{tpu_custom_call.1} parent=11 // pred_region
          %s327 = ssub.s32 512, 512
          %328 = vsyncadd [#allocation9], %s327
          %s329 = sshll.u32 [#allocation10], 4
          %s330 = int_to_ptr.vmem [resolvable:$true] %s329
          %335 = dma.hbm_to_vmem [thread:$0]  %s7, 512, %s330, [#allocation9], 128, 128, 8
        $region28: #{tpu_custom_call.1} parent=11 // pred_fallthru
          _
        // Predicated region
        $region29: #{tpu_custom_call.1} parent=11 // pred_check
          %p336 = pneg %p239
        $region30: #{tpu_custom_call.1} parent=11 // pred_check_branch
          %338 = sbr.rel (%p336) target = $region32
        $region31: #{tpu_custom_call.1} parent=11 // pred_region
          _
        $region32: #{tpu_custom_call.1} parent=11 // pred_fallthru
          _
      $region12: #{tpu_custom_call.1} parent=5 // pred_fallthru
        _
      %p339 = scmp.lt.s32.totalorder %s30, 2
      // Predicated region
      $region33: #{tpu_custom_call.1} parent=5 // pred_check
        %p340 = pneg %p339
      $region34: #{tpu_custom_call.1} parent=5 // pred_check_branch
        %342 = sbr.rel (%p340) target = $region36
      $region35: #{tpu_custom_call.1} parent=5 // pred_region
        // Predicated region
        $region37: #{tpu_custom_call.1} parent=35 // pred_check
          %p343 = pneg %p50
        $region38: #{tpu_custom_call.1} parent=35 // pred_check_branch
          %345 = sbr.rel (%p343) target = $region40
        $region39: #{tpu_custom_call.1} parent=35 // pred_region
          %s346 = sand.u32 %s40, 1
          %s347 = scalar_lea.sflag [#allocation3], %s346
          %s348 = sand.u32 %s40, 1
          %s349 = smul.addr %s348, 32
          %s350 = scalar_lea.vmem [#allocation2], %s349
          %s352 = ssub.s32 512, 512
          %353 = vsyncadd %s347, %s352
          %s354 = smul.addr %s30, 4
          %s355 = smul.addr %s354, 128
          %s356 = scalar_lea.hbm %s0, %s355
          %s357 = sshll.u32 %s350, 4
          %s358 = int_to_ptr.vmem [resolvable:$true] %s357
          %363 = dma.hbm_to_vmem [thread:$0]  %s356, 512, %s358, %s347, 128, 128, 8
        $region40: #{tpu_custom_call.1} parent=35 // pred_fallthru
          _
        // Predicated region
        $region41: #{tpu_custom_call.1} parent=35 // pred_check
          %p364 = pneg %p76
        $region42: #{tpu_custom_call.1} parent=35 // pred_check_branch
          %366 = sbr.rel (%p364) target = $region44
        $region43: #{tpu_custom_call.1} parent=35 // pred_region
          %s367 = sand.u32 %s30, 1
          %s368 = scalar_lea.sflag [#allocation6], %s367
          %s369 = sand.u32 %s66, 1
          %s370 = smul.addr %s369, 32
          %s371 = scalar_lea.vmem [#allocation5], %s370
          %s373 = ssub.s32 512, 512
          %374 = vsyncadd %s368, %s373
          %s375 = smul.addr %s30, 4
          %s376 = smul.addr %s375, 128
          %s377 = scalar_lea.hbm %s1, %s376
          %s378 = sshll.u32 %s371, 4
          %s379 = int_to_ptr.vmem [resolvable:$true] %s378
          %384 = dma.hbm_to_vmem [thread:$0]  %s377, 512, %s379, %s368, 128, 128, 8
        $region44: #{tpu_custom_call.1} parent=35 // pred_fallthru
          _
        // Predicated region
        $region45: #{tpu_custom_call.1} parent=35 // pred_check
          %p385 = pneg %p102
        $region46: #{tpu_custom_call.1} parent=35 // pred_check_branch
          %387 = sbr.rel (%p385) target = $region48
        $region47: #{tpu_custom_call.1} parent=35 // pred_region
          %s388 = sand.u32 %s30, 1
          %s389 = scalar_lea.sflag [#allocation6], %s388
          %s390 = sand.u32 %s92, 1
          %s391 = smul.addr %s390, 32
          %s392 = scalar_lea.vmem [#allocation7], %s391
          %s394 = ssub.s32 512, 512
          %395 = vsyncadd %s389, %s394
          %s396 = smul.addr %s30, 4
          %s397 = smul.addr %s396, 128
          %s398 = scalar_lea.hbm %s2, %s397
          %s399 = sshll.u32 %s392, 4
          %s400 = int_to_ptr.vmem [resolvable:$true] %s399
          %405 = dma.hbm_to_vmem [thread:$0]  %s398, 512, %s400, %s389, 128, 128, 8
        $region48: #{tpu_custom_call.1} parent=35 // pred_fallthru
          _
        // Predicated region
        $region49: #{tpu_custom_call.1} parent=35 // pred_check
          %p406 = pneg %p128
        $region50: #{tpu_custom_call.1} parent=35 // pred_check_branch
          %408 = sbr.rel (%p406) target = $region52
        $region51: #{tpu_custom_call.1} parent=35 // pred_region
          %p409 = scmp.lt.s32.totalorder %s30, 1
          %s410 = scalar_select %p409, %s30, 1
          %s411 = scalar_lea.vmem %s3, %s410
        $region52: #{tpu_custom_call.1} parent=35 // pred_fallthru
          _
      $region36: #{tpu_custom_call.1} parent=5 // pred_fallthru
        _
      %p412 = scmp.le.s32.totalorder 1, %s30
      %p413 = scmp.lt.s32.totalorder %s30, 3
      %p414 = pnand %p412, %p413
      %p415 = pneg %p414
      // Predicated region
      $region53: #{tpu_custom_call.1} parent=5 // pred_check
        _
      $region54: #{tpu_custom_call.1} parent=5 // pred_check_branch
        %417 = sbr.rel (%p414) target = $region56
      $region55: #{tpu_custom_call.1} parent=5 // pred_region
        %s418 = ssub.s32 %s30, 1
        %s419 = sand.u32 %s43, 1
        %s420 = scalar_lea.sflag [#allocation3], %s419
        %s421 = sand.u32 %s43, 1
        %s422 = smul.addr %s421, 32
        %s423 = scalar_lea.vmem [#allocation2], %s422
        // Predicated region
        $region57: #{tpu_custom_call.1} parent=55 // pred_check
          %p424 = pneg %p56
        $region58: #{tpu_custom_call.1} parent=55 // pred_check_branch
          %426 = sbr.rel (%p424) target = $region60
        $region59: #{tpu_custom_call.1} parent=55 // pred_region
          %427 = dma.done %s420, 512
        $region60: #{tpu_custom_call.1} parent=55 // pred_fallthru
          _
        %s428 = sand.u32 %s35, 1
        %s429 = scalar_lea.sflag [#allocation6], %s428
        %s430 = sand.u32 %s69, 1
        %s431 = smul.addr %s430, 32
        %s432 = scalar_lea.vmem [#allocation5], %s431
        // Predicated region
        $region61: #{tpu_custom_call.1} parent=55 // pred_check
          %p433 = pneg %p82
        $region62: #{tpu_custom_call.1} parent=55 // pred_check_branch
          %435 = sbr.rel (%p433) target = $region64
        $region63: #{tpu_custom_call.1} parent=55 // pred_region
          %436 = dma.done %s429, 512
        $region64: #{tpu_custom_call.1} parent=55 // pred_fallthru
          _
        %s437 = sand.u32 %s35, 1
        %s438 = scalar_lea.sflag [#allocation6], %s437
        %s439 = sand.u32 %s95, 1
        %s440 = smul.addr %s439, 32
        %s441 = scalar_lea.vmem [#allocation7], %s440
        // Predicated region
        $region65: #{tpu_custom_call.1} parent=55 // pred_check
          %p442 = pneg %p108
        $region66: #{tpu_custom_call.1} parent=55 // pred_check_branch
          %444 = sbr.rel (%p442) target = $region68
        $region67: #{tpu_custom_call.1} parent=55 // pred_region
          %445 = dma.done %s438, 512
        $region68: #{tpu_custom_call.1} parent=55 // pred_fallthru
          _
        // Predicated region
        $region69: #{tpu_custom_call.1} parent=55 // pred_check
          %p446 = pneg %p197
        $region70: #{tpu_custom_call.1} parent=55 // pred_check_branch
          %448 = sbr.rel (%p446) target = $region72
        $region71: #{tpu_custom_call.1} parent=55 // pred_region
          %449 = dma.done [#allocation9], 128
        $region72: #{tpu_custom_call.1} parent=55 // pred_fallthru
          _
        // Predicated region
        $region73: #{tpu_custom_call.1} parent=55 // pred_check
          %p450 = pneg %p218
        $region74: #{tpu_custom_call.1} parent=55 // pred_check_branch
          %452 = sbr.rel (%p450) target = $region76
        $region75: #{tpu_custom_call.1} parent=55 // pred_region
          %453 = dma.done [#allocation9], 512
        $region76: #{tpu_custom_call.1} parent=55 // pred_fallthru
          _
        %s454 = sand.u32 %s43, 1
        %s455 = scalar_lea.sflag [#allocation3], %s454
        %s456 = sand.u32 %s43, 1
        %s457 = smul.addr %s456, 32
        %s458 = scalar_lea.vmem [#allocation2], %s457
        %p459 = pneg %p56
        %p460 = pneg %p53
        %s461 = sand.u32 %s35, 1
        %s462 = scalar_lea.sflag [#allocation6], %s461
        %s463 = sand.u32 %s69, 1
        %s464 = smul.addr %s463, 32
        %s465 = scalar_lea.vmem [#allocation5], %s464
        %p466 = pneg %p82
        %p467 = pneg %p79
        %s468 = sand.u32 %s35, 1
        %s469 = scalar_lea.sflag [#allocation6], %s468
        %s470 = sand.u32 %s95, 1
        %s471 = smul.addr %s470, 32
        %s472 = scalar_lea.vmem [#allocation7], %s471
        %p473 = pneg %p108
        %p474 = pneg %p105
        %p475 = scmp.lt.s32.totalorder %s35, 1
        %s476 = scalar_select %p475, %s35, 1
        %s477 = scalar_lea.vmem %s3, %s476
        %p478 = pneg %p134
        %p479 = pneg %p131
        %p480 = pneg %p155
        %p481 = pneg %p152
        %p482 = pneg %p176
        %p483 = pneg %p173
        %p484 = pneg %p197
        %p485 = pneg %p194
        %p486 = pneg %p218
        %p487 = pneg %p215
        %p488 = pneg %p239
        %p489 = pneg %p236
        %p490 = pneg %p265
        %p491 = pneg %p262
        %s492 = sand.u32 %s252, 1
        %s493 = scalar_lea.sflag [#allocation4], %s492
        %s494 = sand.u32 %s252, 1
        %s495 = smul.addr %s494, 8
        %s496 = scalar_lea.vmem [#allocation11], %s495
        %p497 = pneg %p291
        %p498 = pneg %p288
        %s499 = sand.u32 %s278, 1
        %s500 = scalar_lea.sflag [#allocation13], %s499
        %s501 = sand.u32 %s278, 1
        %s502 = smul.addr %s501, 32
        %s503 = scalar_lea.vmem [#allocation12], %s502
        %p504 = scmp.lt.s32.totalorder %s35, 1
        %s505 = scalar_select %p504, %s35, 1
        %s506 = scalar_lea.vmem %s3, %s505
        %v507 = vld [vmem:[%s423] sm:$0xff]
        %v508 = vld [vmem:[%s423 + $0x8] sm:$0xff]
        %v509 = vld [vmem:[%s423 + $0x10] sm:$0xff]
        %v510 = vld [vmem:[%s423 + $0x18] sm:$0xff]
        %v511 = vld [vmem:[%s432] sm:$0xff]
        %v512 = vld [vmem:[%s432 + $0x8] sm:$0xff]
        %v513 = vld [vmem:[%s432 + $0x10] sm:$0xff]
        %v514 = vld [vmem:[%s432 + $0x18] sm:$0xff]
        %v515 = vld [vmem:[%s441] sm:$0xff]
        %v516 = vld [vmem:[%s441 + $0x8] sm:$0xff]
        %v517 = vld [vmem:[%s441 + $0x10] sm:$0xff]
        %v518 = vld [vmem:[%s441 + $0x18] sm:$0xff]
        %v519 = vld [vmem:[%s4] sm:$0xff]
        %vm520 = vcmask 64512
        %v522 = vsel %vm520, %v507, 0
        %v525 = vsel %vm520, %v508, 0
        %v528 = vsel %vm520, %v509, 0
        %v531 = vsel %vm520, %v510, 0
        %533 = vmatprep.subr.mxu0 0.0
        %534 = vmatpush1.msra.mxu0 %v519
        %535 = vmatprep.subr.mxu0 0.0
        %536 = vmatpush1.msra.mxu0 0.0
        %537 = vmatprep.subr.mxu0 0.0
        %538 = vmatpush1.msra.mxu0 0.0
        %539 = vmatprep.subr.mxu0 0.0
        %540 = vmatpush1.msra.mxu0 0.0
        %541 = vmatprep.subr.mxu0 0.0
        %542 = vmatpush1.msra.mxu0 0.0
        %543 = vmatprep.subr.mxu0 0.0
        %544 = vmatpush1.msra.mxu0 0.0
        %545 = vmatprep.subr.mxu0 0.0
        %546 = vmatpush1.msra.mxu0 0.0
        %547 = vmatprep.subr.mxu0 0.0
        %548 = vmatpush1.msra.mxu0 0.0
        %549 = vmatprep.subr.mxu0 0.0
        %550 = vmatpush1.msra.mxu0 0.0
        %551 = vmatprep.subr.mxu0 0.0
        %552 = vmatpush1.msra.mxu0 0.0
        %553 = vmatprep.subr.mxu0 0.0
        %554 = vmatpush1.msra.mxu0 0.0
        %555 = vmatprep.subr.mxu0 0.0
        %556 = vmatpush1.msra.mxu0 0.0
        %557 = vmatprep.subr.mxu0 0.0
        %558 = vmatpush1.msra.mxu0 0.0
        %559 = vmatprep.subr.mxu0 0.0
        %560 = vmatpush1.msra.mxu0 0.0
        %561 = vmatprep.subr.mxu0 0.0
        %562 = vmatpush1.msra.mxu0 0.0
        %563 = vmatprep.subr.mxu0 0.0
        %564 = vmatpush1.msra.mxu0 0.0
        %565 = vmatprep.subr.mxu0 0.0
        %566 = vmatpush1.msra.mxu0 0.0
        %567 = vmatprep.subr.mxu0 0.0
        %568 = vmatpush1.msra.mxu0 0.0
        %569 = vmatprep.subr.mxu0 0.0
        %570 = vmatpush1.msra.mxu0 0.0
        %571 = vmatprep.subr.mxu0 0.0
        %572 = vmatpush1.msra.mxu0 0.0
        %573 = vmatprep.subr.mxu0 0.0
        %574 = vmatpush1.msra.mxu0 0.0
        %575 = vmatprep.subr.mxu0 0.0
        %576 = vmatpush1.msra.mxu0 0.0
        %577 = vmatprep.subr.mxu0 0.0
        %578 = vmatpush1.msra.mxu0 0.0
        %579 = vmatprep.subr.mxu0 0.0
        %580 = vmatpush1.msra.mxu0 0.0
        %581 = vmatprep.subr.mxu0 0.0
        %582 = vmatpush1.msra.mxu0 0.0
        %583 = vmatprep.subr.mxu0 0.0
        %584 = vmatpush1.msra.mxu0 0.0
        %585 = vmatprep.subr.mxu0 0.0
        %586 = vmatpush1.msra.mxu0 0.0
        %587 = vmatprep.subr.mxu0 0.0
        %588 = vmatpush1.msra.mxu0 0.0
        %589 = vmatprep.subr.mxu0 0.0
        %590 = vmatpush1.msra.mxu0 0.0
        %591 = vmatprep.subr.mxu0 0.0
        %592 = vmatpush1.msra.mxu0 0.0
        %593 = vmatprep.subr.mxu0 0.0
        %594 = vmatpush1.msra.mxu0 0.0
        %595 = vmatprep.subr.mxu0 0.0
        %596 = vmatpush1.msra.mxu0 0.0
        %597 = vmatprep.mubr.f32.mxu0 0.0
        %598 = vmatmul.mubr.f32.gmra.mrb[0].mxu0 %v522
        %v599 = vpop.f32.mrb[0].mxu0
        %v600 = vadd.f32 0.0, %v599
        %v601 = vpop.f32.mrb[0].mxu0
        %602 = vmatprep.mubr.f32.mxu0 0.0
        %603 = vmatmul.mubr.f32.gmra.mrb[0].mxu0 %v525
        %v604 = vpop.f32.mrb[0].mxu0
        %v605 = vadd.f32 0.0, %v604
        %v606 = vpop.f32.mrb[0].mxu0
        %607 = vmatprep.mubr.f32.mxu0 0.0
        %608 = vmatmul.mubr.f32.gmra.mrb[0].mxu0 %v528
        %v609 = vpop.f32.mrb[0].mxu0
        %v610 = vadd.f32 0.0, %v609
        %v611 = vpop.f32.mrb[0].mxu0
        %612 = vmatprep.mubr.f32.mxu0 0.0
        %613 = vmatmul.mubr.f32.gmra.mrb[0].mxu0 %v531
        %v614 = vpop.f32.mrb[0].mxu0
        %v615 = vadd.f32 0.0, %v614
        %v616 = vpop.f32.mrb[0].mxu0
        %617 = vdwg.mxu0
        %v618 = vld [vmem:[%s5] sm:$0xff]
        %v620 = vsel %vm520, %v511, 0
        %v623 = vsel %vm520, %v512, 0
        %v626 = vsel %vm520, %v513, 0
        %v629 = vsel %vm520, %v514, 0
        %631 = vmatprep.subr.mxu0 0.0
        %632 = vmatpush1.msra.mxu0 %v618
        %633 = vmatprep.subr.mxu0 0.0
        %634 = vmatpush1.msra.mxu0 0.0
        %635 = vmatprep.subr.mxu0 0.0
        %636 = vmatpush1.msra.mxu0 0.0
        %637 = vmatprep.subr.mxu0 0.0
        %638 = vmatpush1.msra.mxu0 0.0
        %639 = vmatprep.subr.mxu0 0.0
        %640 = vmatpush1.msra.mxu0 0.0
        %641 = vmatprep.subr.mxu0 0.0
        %642 = vmatpush1.msra.mxu0 0.0
        %643 = vmatprep.subr.mxu0 0.0
        %644 = vmatpush1.msra.mxu0 0.0
        %645 = vmatprep.subr.mxu0 0.0
        %646 = vmatpush1.msra.mxu0 0.0
        %647 = vmatprep.subr.mxu0 0.0
        %648 = vmatpush1.msra.mxu0 0.0
        %649 = vmatprep.subr.mxu0 0.0
        %650 = vmatpush1.msra.mxu0 0.0
        %651 = vmatprep.subr.mxu0 0.0
        %652 = vmatpush1.msra.mxu0 0.0
        %653 = vmatprep.subr.mxu0 0.0
        %654 = vmatpush1.msra.mxu0 0.0
        %655 = vmatprep.subr.mxu0 0.0
        %656 = vmatpush1.msra.mxu0 0.0
        %657 = vmatprep.subr.mxu0 0.0
        %658 = vmatpush1.msra.mxu0 0.0
        %659 = vmatprep.subr.mxu0 0.0
        %660 = vmatpush1.msra.mxu0 0.0
        %661 = vmatprep.subr.mxu0 0.0
        %662 = vmatpush1.msra.mxu0 0.0
        %663 = vmatprep.subr.mxu0 0.0
        %664 = vmatpush1.msra.mxu0 0.0
        %665 = vmatprep.subr.mxu0 0.0
        %666 = vmatpush1.msra.mxu0 0.0
        %667 = vmatprep.subr.mxu0 0.0
        %668 = vmatpush1.msra.mxu0 0.0
        %669 = vmatprep.subr.mxu0 0.0
        %670 = vmatpush1.msra.mxu0 0.0
        %671 = vmatprep.subr.mxu0 0.0
        %672 = vmatpush1.msra.mxu0 0.0
        %673 = vmatprep.subr.mxu0 0.0
        %674 = vmatpush1.msra.mxu0 0.0
        %675 = vmatprep.subr.mxu0 0.0
        %676 = vmatpush1.msra.mxu0 0.0
        %677 = vmatprep.subr.mxu0 0.0
        %678 = vmatpush1.msra.mxu0 0.0
        %679 = vmatprep.subr.mxu0 0.0
        %680 = vmatpush1.msra.mxu0 0.0
        %681 = vmatprep.subr.mxu0 0.0
        %682 = vmatpush1.msra.mxu0 0.0
        %683 = vmatprep.subr.mxu0 0.0
        %684 = vmatpush1.msra.mxu0 0.0
        %685 = vmatprep.subr.mxu0 0.0
        %686 = vmatpush1.msra.mxu0 0.0
        %687 = vmatprep.subr.mxu0 0.0
        %688 = vmatpush1.msra.mxu0 0.0
        %689 = vmatprep.subr.mxu0 0.0
        %690 = vmatpush1.msra.mxu0 0.0
        %691 = vmatprep.subr.mxu0 0.0
        %692 = vmatpush1.msra.mxu0 0.0
        %693 = vmatprep.subr.mxu0 0.0
        %694 = vmatpush1.msra.mxu0 0.0
        %695 = vmatprep.mubr.f32.mxu0 0.0
        %696 = vmatmul.mubr.f32.gmra.mrb[0].mxu0 %v620
        %v697 = vpop.f32.mrb[0].mxu0
        %v698 = vadd.f32 0.0, %v697
        %v699 = vpop.f32.mrb[0].mxu0
        %700 = vmatprep.mubr.f32.mxu0 0.0
        %701 = vmatmul.mubr.f32.gmra.mrb[0].mxu0 %v623
        %v702 = vpop.f32.mrb[0].mxu0
        %v703 = vadd.f32 0.0, %v702
        %v704 = vpop.f32.mrb[0].mxu0
        %705 = vmatprep.mubr.f32.mxu0 0.0
        %706 = vmatmul.mubr.f32.gmra.mrb[0].mxu0 %v626
        %v707 = vpop.f32.mrb[0].mxu0
        %v708 = vadd.f32 0.0, %v707
        %v709 = vpop.f32.mrb[0].mxu0
        %710 = vmatprep.mubr.f32.mxu0 0.0
        %711 = vmatmul.mubr.f32.gmra.mrb[0].mxu0 %v629
        %v712 = vpop.f32.mrb[0].mxu0
        %v713 = vadd.f32 0.0, %v712
        %v714 = vpop.f32.mrb[0].mxu0
        %715 = vdwg.mxu0
        %v716 = vld [vmem:[#allocation8] sm:$0xff]
        %v718 = vsel %vm520, %v515, 0
        %v721 = vsel %vm520, %v516, 0
        %v724 = vsel %vm520, %v517, 0
        %v727 = vsel %vm520, %v518, 0
        %729 = vmatprep.subr.mxu0 0.0
        %730 = vmatpush1.msra.mxu0 %v716
        %731 = vmatprep.subr.mxu0 0.0
        %732 = vmatpush1.msra.mxu0 0.0
        %733 = vmatprep.subr.mxu0 0.0
        %734 = vmatpush1.msra.mxu0 0.0
        %735 = vmatprep.subr.mxu0 0.0
        %736 = vmatpush1.msra.mxu0 0.0
        %737 = vmatprep.subr.mxu0 0.0
        %738 = vmatpush1.msra.mxu0 0.0
        %739 = vmatprep.subr.mxu0 0.0
        %740 = vmatpush1.msra.mxu0 0.0
        %741 = vmatprep.subr.mxu0 0.0
        %742 = vmatpush1.msra.mxu0 0.0
        %743 = vmatprep.subr.mxu0 0.0
        %744 = vmatpush1.msra.mxu0 0.0
        %745 = vmatprep.subr.mxu0 0.0
        %746 = vmatpush1.msra.mxu0 0.0
        %747 = vmatprep.subr.mxu0 0.0
        %748 = vmatpush1.msra.mxu0 0.0
        %749 = vmatprep.subr.mxu0 0.0
        %750 = vmatpush1.msra.mxu0 0.0
        %751 = vmatprep.subr.mxu0 0.0
        %752 = vmatpush1.msra.mxu0 0.0
        %753 = vmatprep.subr.mxu0 0.0
        %754 = vmatpush1.msra.mxu0 0.0
        %755 = vmatprep.subr.mxu0 0.0
        %756 = vmatpush1.msra.mxu0 0.0
        %757 = vmatprep.subr.mxu0 0.0
        %758 = vmatpush1.msra.mxu0 0.0
        %759 = vmatprep.subr.mxu0 0.0
        %760 = vmatpush1.msra.mxu0 0.0
        %761 = vmatprep.subr.mxu0 0.0
        %762 = vmatpush1.msra.mxu0 0.0
        %763 = vmatprep.subr.mxu0 0.0
        %764 = vmatpush1.msra.mxu0 0.0
        %765 = vmatprep.subr.mxu0 0.0
        %766 = vmatpush1.msra.mxu0 0.0
        %767 = vmatprep.subr.mxu0 0.0
        %768 = vmatpush1.msra.mxu0 0.0
        %769 = vmatprep.subr.mxu0 0.0
        %770 = vmatpush1.msra.mxu0 0.0
        %771 = vmatprep.subr.mxu0 0.0
        %772 = vmatpush1.msra.mxu0 0.0
        %773 = vmatprep.subr.mxu0 0.0
        %774 = vmatpush1.msra.mxu0 0.0
        %775 = vmatprep.subr.mxu0 0.0
        %776 = vmatpush1.msra.mxu0 0.0
        %777 = vmatprep.subr.mxu0 0.0
        %778 = vmatpush1.msra.mxu0 0.0
        %779 = vmatprep.subr.mxu0 0.0
        %780 = vmatpush1.msra.mxu0 0.0
        %781 = vmatprep.subr.mxu0 0.0
        %782 = vmatpush1.msra.mxu0 0.0
        %783 = vmatprep.subr.mxu0 0.0
        %784 = vmatpush1.msra.mxu0 0.0
        %785 = vmatprep.subr.mxu0 0.0
        %786 = vmatpush1.msra.mxu0 0.0
        %787 = vmatprep.subr.mxu0 0.0
        %788 = vmatpush1.msra.mxu0 0.0
        %789 = vmatprep.subr.mxu0 0.0
        %790 = vmatpush1.msra.mxu0 0.0
        %791 = vmatprep.subr.mxu0 0.0
        %792 = vmatpush1.msra.mxu0 0.0
        %793 = vmatprep.mubr.f32.mxu0 0.0
        %794 = vmatmul.mubr.f32.gmra.mrb[0].mxu0 %v718
        %v795 = vpop.f32.mrb[0].mxu0
        %v796 = vadd.f32 0.0, %v795
        %v797 = vpop.f32.mrb[0].mxu0
        %798 = vmatprep.mubr.f32.mxu0 0.0
        %799 = vmatmul.mubr.f32.gmra.mrb[0].mxu0 %v721
        %v800 = vpop.f32.mrb[0].mxu0
        %v801 = vadd.f32 0.0, %v800
        %v802 = vpop.f32.mrb[0].mxu0
        %803 = vmatprep.mubr.f32.mxu0 0.0
        %804 = vmatmul.mubr.f32.gmra.mrb[0].mxu0 %v724
        %v805 = vpop.f32.mrb[0].mxu0
        %v806 = vadd.f32 0.0, %v805
        %v807 = vpop.f32.mrb[0].mxu0
        %808 = vmatprep.mubr.f32.mxu0 0.0
        %809 = vmatmul.mubr.f32.gmra.mrb[0].mxu0 %v727
        %v810 = vpop.f32.mrb[0].mxu0
        %v811 = vadd.f32 0.0, %v810
        %v812 = vpop.f32.mrb[0].mxu0
        %813 = vdwg.mxu0
        %v814 = vld [vmem:[%s506] sm:$0x1]
        %v816 = vlaneseq
        %v817 = vshrl.u32 %v816, 7
        %v818 = vsub.s32 0, %v817
        %v819 = vrot.slane %v814, %v818
        %v822 = vsel %vm520, %v600, 0
        %v825 = vsel %vm520, %v698, 0
        %827 = vmatprep.subr.mxu0 0.0
        %828 = vmatpush1.xpose.msra.mxu0 %v825
        %829 = vmatprep.subr.mxu0 0.0
        %830 = vmatpush1.xpose.msra.mxu0 0.0
        %831 = vmatprep.subr.mxu0 0.0
        %832 = vmatpush1.xpose.msra.mxu0 0.0
        %833 = vmatprep.subr.mxu0 0.0
        %834 = vmatpush1.xpose.msra.mxu0 0.0
        %835 = vmatprep.subr.mxu0 0.0
        %836 = vmatpush1.xpose.msra.mxu0 0.0
        %837 = vmatprep.subr.mxu0 0.0
        %838 = vmatpush1.xpose.msra.mxu0 0.0
        %839 = vmatprep.subr.mxu0 0.0
        %840 = vmatpush1.xpose.msra.mxu0 0.0
        %841 = vmatprep.subr.mxu0 0.0
        %842 = vmatpush1.xpose.msra.mxu0 0.0
        %843 = vmatprep.subr.mxu0 0.0
        %844 = vmatpush1.xpose.msra.mxu0 0.0
        %845 = vmatprep.subr.mxu0 0.0
        %846 = vmatpush1.xpose.msra.mxu0 0.0
        %847 = vmatprep.subr.mxu0 0.0
        %848 = vmatpush1.xpose.msra.mxu0 0.0
        %849 = vmatprep.subr.mxu0 0.0
        %850 = vmatpush1.xpose.msra.mxu0 0.0
        %851 = vmatprep.subr.mxu0 0.0
        %852 = vmatpush1.xpose.msra.mxu0 0.0
        %853 = vmatprep.subr.mxu0 0.0
        %854 = vmatpush1.xpose.msra.mxu0 0.0
        %855 = vmatprep.subr.mxu0 0.0
        %856 = vmatpush1.xpose.msra.mxu0 0.0
        %857 = vmatprep.subr.mxu0 0.0
        %858 = vmatpush1.xpose.msra.mxu0 0.0
        %859 = vmatprep.subr.mxu0 0.0
        %860 = vmatpush1.xpose.msra.mxu0 0.0
        %861 = vmatprep.subr.mxu0 0.0
        %862 = vmatpush1.xpose.msra.mxu0 0.0
        %863 = vmatprep.subr.mxu0 0.0
        %864 = vmatpush1.xpose.msra.mxu0 0.0
        %865 = vmatprep.subr.mxu0 0.0
        %866 = vmatpush1.xpose.msra.mxu0 0.0
        %867 = vmatprep.subr.mxu0 0.0
        %868 = vmatpush1.xpose.msra.mxu0 0.0
        %869 = vmatprep.subr.mxu0 0.0
        %870 = vmatpush1.xpose.msra.mxu0 0.0
        %871 = vmatprep.subr.mxu0 0.0
        %872 = vmatpush1.xpose.msra.mxu0 0.0
        %873 = vmatprep.subr.mxu0 0.0
        %874 = vmatpush1.xpose.msra.mxu0 0.0
        %875 = vmatprep.subr.mxu0 0.0
        %876 = vmatpush1.xpose.msra.mxu0 0.0
        %877 = vmatprep.subr.mxu0 0.0
        %878 = vmatpush1.xpose.msra.mxu0 0.0
        %879 = vmatprep.subr.mxu0 0.0
        %880 = vmatpush1.xpose.msra.mxu0 0.0
        %881 = vmatprep.subr.mxu0 0.0
        %882 = vmatpush1.xpose.msra.mxu0 0.0
        %883 = vmatprep.subr.mxu0 0.0
        %884 = vmatpush1.xpose.msra.mxu0 0.0
        %885 = vmatprep.subr.mxu0 0.0
        %886 = vmatpush1.xpose.msra.mxu0 0.0
        %887 = vmatprep.subr.mxu0 0.0
        %888 = vmatpush1.xpose.msra.mxu0 0.0
        %889 = vmatprep.subr.mxu0 0.0
        %890 = vmatpush1.xpose.msra.mxu0 0.0
        %891 = vmatprep.mubr.f32.mxu0 0.0
        %892 = vmatmul.mubr.f32.gmra.mrb[0].mxu0 %v822
        %v893 = vpop.f32.mrb[0].mxu0
        %v894 = vadd.f32 %v819, %v893
        %v895 = vpop.f32.mrb[0].mxu0
        %896 = vdwg.mxu0
        %v898 = vsel %vm520, %v605, 0
        %v901 = vsel %vm520, %v703, 0
        %903 = vmatprep.subr.mxu0 0.0
        %904 = vmatpush1.xpose.msra.mxu0 %v901
        %905 = vmatprep.subr.mxu0 0.0
        %906 = vmatpush1.xpose.msra.mxu0 0.0
        %907 = vmatprep.subr.mxu0 0.0
        %908 = vmatpush1.xpose.msra.mxu0 0.0
        %909 = vmatprep.subr.mxu0 0.0
        %910 = vmatpush1.xpose.msra.mxu0 0.0
        %911 = vmatprep.subr.mxu0 0.0
        %912 = vmatpush1.xpose.msra.mxu0 0.0
        %913 = vmatprep.subr.mxu0 0.0
        %914 = vmatpush1.xpose.msra.mxu0 0.0
        %915 = vmatprep.subr.mxu0 0.0
        %916 = vmatpush1.xpose.msra.mxu0 0.0
        %917 = vmatprep.subr.mxu0 0.0
        %918 = vmatpush1.xpose.msra.mxu0 0.0
        %919 = vmatprep.subr.mxu0 0.0
        %920 = vmatpush1.xpose.msra.mxu0 0.0
        %921 = vmatprep.subr.mxu0 0.0
        %922 = vmatpush1.xpose.msra.mxu0 0.0
        %923 = vmatprep.subr.mxu0 0.0
        %924 = vmatpush1.xpose.msra.mxu0 0.0
        %925 = vmatprep.subr.mxu0 0.0
        %926 = vmatpush1.xpose.msra.mxu0 0.0
        %927 = vmatprep.subr.mxu0 0.0
        %928 = vmatpush1.xpose.msra.mxu0 0.0
        %929 = vmatprep.subr.mxu0 0.0
        %930 = vmatpush1.xpose.msra.mxu0 0.0
        %931 = vmatprep.subr.mxu0 0.0
        %932 = vmatpush1.xpose.msra.mxu0 0.0
        %933 = vmatprep.subr.mxu0 0.0
        %934 = vmatpush1.xpose.msra.mxu0 0.0
        %935 = vmatprep.subr.mxu0 0.0
        %936 = vmatpush1.xpose.msra.mxu0 0.0
        %937 = vmatprep.subr.mxu0 0.0
        %938 = vmatpush1.xpose.msra.mxu0 0.0
        %939 = vmatprep.subr.mxu0 0.0
        %940 = vmatpush1.xpose.msra.mxu0 0.0
        %941 = vmatprep.subr.mxu0 0.0
        %942 = vmatpush1.xpose.msra.mxu0 0.0
        %943 = vmatprep.subr.mxu0 0.0
        %944 = vmatpush1.xpose.msra.mxu0 0.0
        %945 = vmatprep.subr.mxu0 0.0
        %946 = vmatpush1.xpose.msra.mxu0 0.0
        %947 = vmatprep.subr.mxu0 0.0
        %948 = vmatpush1.xpose.msra.mxu0 0.0
        %949 = vmatprep.subr.mxu0 0.0
        %950 = vmatpush1.xpose.msra.mxu0 0.0
        %951 = vmatprep.subr.mxu0 0.0
        %952 = vmatpush1.xpose.msra.mxu0 0.0
        %953 = vmatprep.subr.mxu0 0.0
        %954 = vmatpush1.xpose.msra.mxu0 0.0
        %955 = vmatprep.subr.mxu0 0.0
        %956 = vmatpush1.xpose.msra.mxu0 0.0
        %957 = vmatprep.subr.mxu0 0.0
        %958 = vmatpush1.xpose.msra.mxu0 0.0
        %959 = vmatprep.subr.mxu0 0.0
        %960 = vmatpush1.xpose.msra.mxu0 0.0
        %961 = vmatprep.subr.mxu0 0.0
        %962 = vmatpush1.xpose.msra.mxu0 0.0
        %963 = vmatprep.subr.mxu0 0.0
        %964 = vmatpush1.xpose.msra.mxu0 0.0
        %965 = vmatprep.subr.mxu0 0.0
        %966 = vmatpush1.xpose.msra.mxu0 0.0
        %967 = vmatprep.mubr.f32.mxu0 0.0
        %968 = vmatmul.mubr.f32.gmra.mrb[0].mxu0 %v898
        %v969 = vpop.f32.mrb[0].mxu0
        %v970 = vadd.f32 %v819, %v969
        %v971 = vpop.f32.mrb[0].mxu0
        %972 = vdwg.mxu0
        %v974 = vsel %vm520, %v610, 0
        %v977 = vsel %vm520, %v708, 0
        %979 = vmatprep.subr.mxu0 0.0
        %980 = vmatpush1.xpose.msra.mxu0 %v977
        %981 = vmatprep.subr.mxu0 0.0
        %982 = vmatpush1.xpose.msra.mxu0 0.0
        %983 = vmatprep.subr.mxu0 0.0
        %984 = vmatpush1.xpose.msra.mxu0 0.0
        %985 = vmatprep.subr.mxu0 0.0
        %986 = vmatpush1.xpose.msra.mxu0 0.0
        %987 = vmatprep.subr.mxu0 0.0
        %988 = vmatpush1.xpose.msra.mxu0 0.0
        %989 = vmatprep.subr.mxu0 0.0
        %990 = vmatpush1.xpose.msra.mxu0 0.0
        %991 = vmatprep.subr.mxu0 0.0
        %992 = vmatpush1.xpose.msra.mxu0 0.0
        %993 = vmatprep.subr.mxu0 0.0
        %994 = vmatpush1.xpose.msra.mxu0 0.0
        %995 = vmatprep.subr.mxu0 0.0
        %996 = vmatpush1.xpose.msra.mxu0 0.0
        %997 = vmatprep.subr.mxu0 0.0
        %998 = vmatpush1.xpose.msra.mxu0 0.0
        %999 = vmatprep.subr.mxu0 0.0
        %1000 = vmatpush1.xpose.msra.mxu0 0.0
        %1001 = vmatprep.subr.mxu0 0.0
        %1002 = vmatpush1.xpose.msra.mxu0 0.0
        %1003 = vmatprep.subr.mxu0 0.0
        %1004 = vmatpush1.xpose.msra.mxu0 0.0
        %1005 = vmatprep.subr.mxu0 0.0
        %1006 = vmatpush1.xpose.msra.mxu0 0.0
        %1007 = vmatprep.subr.mxu0 0.0
        %1008 = vmatpush1.xpose.msra.mxu0 0.0
        %1009 = vmatprep.subr.mxu0 0.0
        %1010 = vmatpush1.xpose.msra.mxu0 0.0
        %1011 = vmatprep.subr.mxu0 0.0
        %1012 = vmatpush1.xpose.msra.mxu0 0.0
        %1013 = vmatprep.subr.mxu0 0.0
        %1014 = vmatpush1.xpose.msra.mxu0 0.0
        %1015 = vmatprep.subr.mxu0 0.0
        %1016 = vmatpush1.xpose.msra.mxu0 0.0
        %1017 = vmatprep.subr.mxu0 0.0
        %1018 = vmatpush1.xpose.msra.mxu0 0.0
        %1019 = vmatprep.subr.mxu0 0.0
        %1020 = vmatpush1.xpose.msra.mxu0 0.0
        %1021 = vmatprep.subr.mxu0 0.0
        %1022 = vmatpush1.xpose.msra.mxu0 0.0
        %1023 = vmatprep.subr.mxu0 0.0
        %1024 = vmatpush1.xpose.msra.mxu0 0.0
        %1025 = vmatprep.subr.mxu0 0.0
        %1026 = vmatpush1.xpose.msra.mxu0 0.0
        %1027 = vmatprep.subr.mxu0 0.0
        %1028 = vmatpush1.xpose.msra.mxu0 0.0
        %1029 = vmatprep.subr.mxu0 0.0
        %1030 = vmatpush1.xpose.msra.mxu0 0.0
        %1031 = vmatprep.subr.mxu0 0.0
        %1032 = vmatpush1.xpose.msra.mxu0 0.0
        %1033 = vmatprep.subr.mxu0 0.0
        %1034 = vmatpush1.xpose.msra.mxu0 0.0
        %1035 = vmatprep.subr.mxu0 0.0
        %1036 = vmatpush1.xpose.msra.mxu0 0.0
        %1037 = vmatprep.subr.mxu0 0.0
        %1038 = vmatpush1.xpose.msra.mxu0 0.0
        %1039 = vmatprep.subr.mxu0 0.0
        %1040 = vmatpush1.xpose.msra.mxu0 0.0
        %1041 = vmatprep.subr.mxu0 0.0
        %1042 = vmatpush1.xpose.msra.mxu0 0.0
        %1043 = vmatprep.mubr.f32.mxu0 0.0
        %1044 = vmatmul.mubr.f32.gmra.mrb[0].mxu0 %v974
        %v1045 = vpop.f32.mrb[0].mxu0
        %v1046 = vadd.f32 %v819, %v1045
        %v1047 = vpop.f32.mrb[0].mxu0
        %1048 = vdwg.mxu0
        %v1050 = vsel %vm520, %v615, 0
        %v1053 = vsel %vm520, %v713, 0
        %1055 = vmatprep.subr.mxu0 0.0
        %1056 = vmatpush1.xpose.msra.mxu0 %v1053
        %1057 = vmatprep.subr.mxu0 0.0
        %1058 = vmatpush1.xpose.msra.mxu0 0.0
        %1059 = vmatprep.subr.mxu0 0.0
        %1060 = vmatpush1.xpose.msra.mxu0 0.0
        %1061 = vmatprep.subr.mxu0 0.0
        %1062 = vmatpush1.xpose.msra.mxu0 0.0
        %1063 = vmatprep.subr.mxu0 0.0
        %1064 = vmatpush1.xpose.msra.mxu0 0.0
        %1065 = vmatprep.subr.mxu0 0.0
        %1066 = vmatpush1.xpose.msra.mxu0 0.0
        %1067 = vmatprep.subr.mxu0 0.0
        %1068 = vmatpush1.xpose.msra.mxu0 0.0
        %1069 = vmatprep.subr.mxu0 0.0
        %1070 = vmatpush1.xpose.msra.mxu0 0.0
        %1071 = vmatprep.subr.mxu0 0.0
        %1072 = vmatpush1.xpose.msra.mxu0 0.0
        %1073 = vmatprep.subr.mxu0 0.0
        %1074 = vmatpush1.xpose.msra.mxu0 0.0
        %1075 = vmatprep.subr.mxu0 0.0
        %1076 = vmatpush1.xpose.msra.mxu0 0.0
        %1077 = vmatprep.subr.mxu0 0.0
        %1078 = vmatpush1.xpose.msra.mxu0 0.0
        %1079 = vmatprep.subr.mxu0 0.0
        %1080 = vmatpush1.xpose.msra.mxu0 0.0
        %1081 = vmatprep.subr.mxu0 0.0
        %1082 = vmatpush1.xpose.msra.mxu0 0.0
        %1083 = vmatprep.subr.mxu0 0.0
        %1084 = vmatpush1.xpose.msra.mxu0 0.0
        %1085 = vmatprep.subr.mxu0 0.0
        %1086 = vmatpush1.xpose.msra.mxu0 0.0
        %1087 = vmatprep.subr.mxu0 0.0
        %1088 = vmatpush1.xpose.msra.mxu0 0.0
        %1089 = vmatprep.subr.mxu0 0.0
        %1090 = vmatpush1.xpose.msra.mxu0 0.0
        %1091 = vmatprep.subr.mxu0 0.0
        %1092 = vmatpush1.xpose.msra.mxu0 0.0
        %1093 = vmatprep.subr.mxu0 0.0
        %1094 = vmatpush1.xpose.msra.mxu0 0.0
        %1095 = vmatprep.subr.mxu0 0.0
        %1096 = vmatpush1.xpose.msra.mxu0 0.0
        %1097 = vmatprep.subr.mxu0 0.0
        %1098 = vmatpush1.xpose.msra.mxu0 0.0
        %1099 = vmatprep.subr.mxu0 0.0
        %1100 = vmatpush1.xpose.msra.mxu0 0.0
        %1101 = vmatprep.subr.mxu0 0.0
        %1102 = vmatpush1.xpose.msra.mxu0 0.0
        %1103 = vmatprep.subr.mxu0 0.0
        %1104 = vmatpush1.xpose.msra.mxu0 0.0
        %1105 = vmatprep.subr.mxu0 0.0
        %1106 = vmatpush1.xpose.msra.mxu0 0.0
        %1107 = vmatprep.subr.mxu0 0.0
        %1108 = vmatpush1.xpose.msra.mxu0 0.0
        %1109 = vmatprep.subr.mxu0 0.0
        %1110 = vmatpush1.xpose.msra.mxu0 0.0
        %1111 = vmatprep.subr.mxu0 0.0
        %1112 = vmatpush1.xpose.msra.mxu0 0.0
        %1113 = vmatprep.subr.mxu0 0.0
        %1114 = vmatpush1.xpose.msra.mxu0 0.0
        %1115 = vmatprep.subr.mxu0 0.0
        %1116 = vmatpush1.xpose.msra.mxu0 0.0
        %1117 = vmatprep.subr.mxu0 0.0
        %1118 = vmatpush1.xpose.msra.mxu0 0.0
        %1119 = vmatprep.mubr.f32.mxu0 0.0
        %1120 = vmatmul.mubr.f32.gmra.mrb[0].mxu0 %v1050
        %v1121 = vpop.f32.mrb[0].mxu0
        %v1122 = vadd.f32 %v819, %v1121
        %v1123 = vpop.f32.mrb[0].mxu0
        %1124 = vdwg.mxu0
        %v1125 = vsel %vm520, %v894, -inf
        %1126 = vmax.xlane.f32.xlu0 %v1125
        %v1127 = vpop.xlane.xlu0 %1126
        %v1128 = vsel %vm520, %v970, -inf
        %1129 = vmax.xlane.f32.xlu0 %v1128
        %v1130 = vpop.xlane.xlu0 %1129
        %v1131 = vsel %vm520, %v1046, -inf
        %1132 = vmax.xlane.f32.xlu0 %v1131
        %v1133 = vpop.xlane.xlu0 %1132
        %v1134 = vsel %vm520, %v1122, -inf
        %1135 = vmax.xlane.f32.xlu0 %v1134
        %v1136 = vpop.xlane.xlu0 %1135
        %v1137 = vsub.f32 %v894, %v1127
        %v1138 = vsub.f32 %v970, %v1130
        %v1139 = vsub.f32 %v1046, %v1133
        %v1140 = vsub.f32 %v1122, %v1136
        %v1141 = vmul.f32 %v1137, 1.442695
        %v1142 = vpow.pop %v1141
        %v1143 = vmul.f32 %v1138, 1.442695
        %v1144 = vpow.pop %v1143
        %v1145 = vmul.f32 %v1139, 1.442695
        %v1146 = vpow.pop %v1145
        %v1147 = vmul.f32 %v1140, 1.442695
        %v1148 = vpow.pop %v1147
        %v1149 = vsel %vm520, %v1142, 0.0
        %1150 = vadd.xlane.f32.xlu0 %v1149
        %v1151 = vpop.xlane.xlu0 %1150
        %v1152 = vsel %vm520, %v1144, 0.0
        %1153 = vadd.xlane.f32.xlu0 %v1152
        %v1154 = vpop.xlane.xlu0 %1153
        %v1155 = vsel %vm520, %v1146, 0.0
        %1156 = vadd.xlane.f32.xlu0 %v1155
        %v1157 = vpop.xlane.xlu0 %1156
        %v1158 = vsel %vm520, %v1148, 0.0
        %1159 = vadd.xlane.f32.xlu0 %v1158
        %v1160 = vpop.xlane.xlu0 %1159
        %v1161 = vrcp.pop %v1151
        %v1162 = vrcp.pop %v1154
        %v1163 = vrcp.pop %v1157
        %v1164 = vrcp.pop %v1160
        %v1165 = vmul.f32 %v1142, %v1161
        %v1166 = vmul.f32 %v1144, %v1162
        %v1167 = vmul.f32 %v1146, %v1163
        %v1168 = vmul.f32 %v1148, %v1164
        %1169 = vst.msk [vmem:[%s503] sm:$0xff] %vm520, %v1165
        %1170 = vst.msk [vmem:[%s503 + $0x8] sm:$0xff] %vm520, %v1166
        %1171 = vst.msk [vmem:[%s503 + $0x10] sm:$0xff] %vm520, %v1167
        %1172 = vst.msk [vmem:[%s503 + $0x18] sm:$0xff] %vm520, %v1168
        %v1174 = vsel %vm520, %v1165, 0
        %1176 = vmatprep.subr.mxu0 0.0
        %1177 = vmatpush1.msra.mxu0 %v796
        %1178 = vmatprep.subr.mxu0 0.0
        %1179 = vmatpush1.msra.mxu0 0.0
        %1180 = vmatprep.subr.mxu0 0.0
        %1181 = vmatpush1.msra.mxu0 0.0
        %1182 = vmatprep.subr.mxu0 0.0
        %1183 = vmatpush1.msra.mxu0 0.0
        %1184 = vmatprep.subr.mxu0 0.0
        %1185 = vmatpush1.msra.mxu0 0.0
        %1186 = vmatprep.subr.mxu0 0.0
        %1187 = vmatpush1.msra.mxu0 0.0
        %1188 = vmatprep.subr.mxu0 0.0
        %1189 = vmatpush1.msra.mxu0 0.0
        %1190 = vmatprep.subr.mxu0 0.0
        %1191 = vmatpush1.msra.mxu0 0.0
        %1192 = vmatprep.subr.mxu0 0.0
        %1193 = vmatpush1.msra.mxu0 0.0
        %1194 = vmatprep.subr.mxu0 0.0
        %1195 = vmatpush1.msra.mxu0 0.0
        %1196 = vmatprep.subr.mxu0 0.0
        %1197 = vmatpush1.msra.mxu0 0.0
        %1198 = vmatprep.subr.mxu0 0.0
        %1199 = vmatpush1.msra.mxu0 0.0
        %1200 = vmatprep.subr.mxu0 0.0
        %1201 = vmatpush1.msra.mxu0 0.0
        %1202 = vmatprep.subr.mxu0 0.0
        %1203 = vmatpush1.msra.mxu0 0.0
        %1204 = vmatprep.subr.mxu0 0.0
        %1205 = vmatpush1.msra.mxu0 0.0
        %1206 = vmatprep.subr.mxu0 0.0
        %1207 = vmatpush1.msra.mxu0 0.0
        %1208 = vmatprep.subr.mxu0 0.0
        %1209 = vmatpush1.msra.mxu0 0.0
        %1210 = vmatprep.subr.mxu0 0.0
        %1211 = vmatpush1.msra.mxu0 0.0
        %1212 = vmatprep.subr.mxu0 0.0
        %1213 = vmatpush1.msra.mxu0 0.0
        %1214 = vmatprep.subr.mxu0 0.0
        %1215 = vmatpush1.msra.mxu0 0.0
        %1216 = vmatprep.subr.mxu0 0.0
        %1217 = vmatpush1.msra.mxu0 0.0
        %1218 = vmatprep.subr.mxu0 0.0
        %1219 = vmatpush1.msra.mxu0 0.0
        %1220 = vmatprep.subr.mxu0 0.0
        %1221 = vmatpush1.msra.mxu0 0.0
        %1222 = vmatprep.subr.mxu0 0.0
        %1223 = vmatpush1.msra.mxu0 0.0
        %1224 = vmatprep.subr.mxu0 0.0
        %1225 = vmatpush1.msra.mxu0 0.0
        %1226 = vmatprep.subr.mxu0 0.0
        %1227 = vmatpush1.msra.mxu0 0.0
        %1228 = vmatprep.subr.mxu0 0.0
        %1229 = vmatpush1.msra.mxu0 0.0
        %1230 = vmatprep.subr.mxu0 0.0
        %1231 = vmatpush1.msra.mxu0 0.0
        %1232 = vmatprep.subr.mxu0 0.0
        %1233 = vmatpush1.msra.mxu0 0.0
        %1234 = vmatprep.subr.mxu0 0.0
        %1235 = vmatpush1.msra.mxu0 0.0
        %1236 = vmatprep.subr.mxu0 0.0
        %1237 = vmatpush1.msra.mxu0 0.0
        %1238 = vmatprep.subr.mxu0 0.0
        %1239 = vmatpush1.msra.mxu0 0.0
        %1240 = vmatprep.mubr.f32.mxu0 0.0
        %1241 = vmatmul.mubr.f32.gmra.mrb[0].mxu0 %v1174
        %v1242 = vpop.f32.mrb[0].mxu0
        %v1243 = vadd.f32 0.0, %v1242
        %v1244 = vpop.f32.mrb[0].mxu0
        %1245 = vdwg.mxu0
        %v1247 = vsel %vm520, %v1166, 0
        %1249 = vmatprep.subr.mxu0 0.0
        %1250 = vmatpush1.msra.mxu0 %v801
        %1251 = vmatprep.subr.mxu0 0.0
        %1252 = vmatpush1.msra.mxu0 0.0
        %1253 = vmatprep.subr.mxu0 0.0
        %1254 = vmatpush1.msra.mxu0 0.0
        %1255 = vmatprep.subr.mxu0 0.0
        %1256 = vmatpush1.msra.mxu0 0.0
        %1257 = vmatprep.subr.mxu0 0.0
        %1258 = vmatpush1.msra.mxu0 0.0
        %1259 = vmatprep.subr.mxu0 0.0
        %1260 = vmatpush1.msra.mxu0 0.0
        %1261 = vmatprep.subr.mxu0 0.0
        %1262 = vmatpush1.msra.mxu0 0.0
        %1263 = vmatprep.subr.mxu0 0.0
        %1264 = vmatpush1.msra.mxu0 0.0
        %1265 = vmatprep.subr.mxu0 0.0
        %1266 = vmatpush1.msra.mxu0 0.0
        %1267 = vmatprep.subr.mxu0 0.0
        %1268 = vmatpush1.msra.mxu0 0.0
        %1269 = vmatprep.subr.mxu0 0.0
        %1270 = vmatpush1.msra.mxu0 0.0
        %1271 = vmatprep.subr.mxu0 0.0
        %1272 = vmatpush1.msra.mxu0 0.0
        %1273 = vmatprep.subr.mxu0 0.0
        %1274 = vmatpush1.msra.mxu0 0.0
        %1275 = vmatprep.subr.mxu0 0.0
        %1276 = vmatpush1.msra.mxu0 0.0
        %1277 = vmatprep.subr.mxu0 0.0
        %1278 = vmatpush1.msra.mxu0 0.0
        %1279 = vmatprep.subr.mxu0 0.0
        %1280 = vmatpush1.msra.mxu0 0.0
        %1281 = vmatprep.subr.mxu0 0.0
        %1282 = vmatpush1.msra.mxu0 0.0
        %1283 = vmatprep.subr.mxu0 0.0
        %1284 = vmatpush1.msra.mxu0 0.0
        %1285 = vmatprep.subr.mxu0 0.0
        %1286 = vmatpush1.msra.mxu0 0.0
        %1287 = vmatprep.subr.mxu0 0.0
        %1288 = vmatpush1.msra.mxu0 0.0
        %1289 = vmatprep.subr.mxu0 0.0
        %1290 = vmatpush1.msra.mxu0 0.0
        %1291 = vmatprep.subr.mxu0 0.0
        %1292 = vmatpush1.msra.mxu0 0.0
        %1293 = vmatprep.subr.mxu0 0.0
        %1294 = vmatpush1.msra.mxu0 0.0
        %1295 = vmatprep.subr.mxu0 0.0
        %1296 = vmatpush1.msra.mxu0 0.0
        %1297 = vmatprep.subr.mxu0 0.0
        %1298 = vmatpush1.msra.mxu0 0.0
        %1299 = vmatprep.subr.mxu0 0.0
        %1300 = vmatpush1.msra.mxu0 0.0
        %1301 = vmatprep.subr.mxu0 0.0
        %1302 = vmatpush1.msra.mxu0 0.0
        %1303 = vmatprep.subr.mxu0 0.0
        %1304 = vmatpush1.msra.mxu0 0.0
        %1305 = vmatprep.subr.mxu0 0.0
        %1306 = vmatpush1.msra.mxu0 0.0
        %1307 = vmatprep.subr.mxu0 0.0
        %1308 = vmatpush1.msra.mxu0 0.0
        %1309 = vmatprep.subr.mxu0 0.0
        %1310 = vmatpush1.msra.mxu0 0.0
        %1311 = vmatprep.subr.mxu0 0.0
        %1312 = vmatpush1.msra.mxu0 0.0
        %1313 = vmatprep.mubr.f32.mxu0 0.0
        %1314 = vmatmul.mubr.f32.gmra.mrb[0].mxu0 %v1247
        %v1315 = vpop.f32.mrb[0].mxu0
        %v1316 = vadd.f32 0.0, %v1315
        %v1317 = vpop.f32.mrb[0].mxu0
        %1318 = vdwg.mxu0
        %v1320 = vsel %vm520, %v1167, 0
        %1322 = vmatprep.subr.mxu0 0.0
        %1323 = vmatpush1.msra.mxu0 %v806
        %1324 = vmatprep.subr.mxu0 0.0
        %1325 = vmatpush1.msra.mxu0 0.0
        %1326 = vmatprep.subr.mxu0 0.0
        %1327 = vmatpush1.msra.mxu0 0.0
        %1328 = vmatprep.subr.mxu0 0.0
        %1329 = vmatpush1.msra.mxu0 0.0
        %1330 = vmatprep.subr.mxu0 0.0
        %1331 = vmatpush1.msra.mxu0 0.0
        %1332 = vmatprep.subr.mxu0 0.0
        %1333 = vmatpush1.msra.mxu0 0.0
        %1334 = vmatprep.subr.mxu0 0.0
        %1335 = vmatpush1.msra.mxu0 0.0
        %1336 = vmatprep.subr.mxu0 0.0
        %1337 = vmatpush1.msra.mxu0 0.0
        %1338 = vmatprep.subr.mxu0 0.0
        %1339 = vmatpush1.msra.mxu0 0.0
        %1340 = vmatprep.subr.mxu0 0.0
        %1341 = vmatpush1.msra.mxu0 0.0
        %1342 = vmatprep.subr.mxu0 0.0
        %1343 = vmatpush1.msra.mxu0 0.0
        %1344 = vmatprep.subr.mxu0 0.0
        %1345 = vmatpush1.msra.mxu0 0.0
        %1346 = vmatprep.subr.mxu0 0.0
        %1347 = vmatpush1.msra.mxu0 0.0
        %1348 = vmatprep.subr.mxu0 0.0
        %1349 = vmatpush1.msra.mxu0 0.0
        %1350 = vmatprep.subr.mxu0 0.0
        %1351 = vmatpush1.msra.mxu0 0.0
        %1352 = vmatprep.subr.mxu0 0.0
        %1353 = vmatpush1.msra.mxu0 0.0
        %1354 = vmatprep.subr.mxu0 0.0
        %1355 = vmatpush1.msra.mxu0 0.0
        %1356 = vmatprep.subr.mxu0 0.0
        %1357 = vmatpush1.msra.mxu0 0.0
        %1358 = vmatprep.subr.mxu0 0.0
        %1359 = vmatpush1.msra.mxu0 0.0
        %1360 = vmatprep.subr.mxu0 0.0
        %1361 = vmatpush1.msra.mxu0 0.0
        %1362 = vmatprep.subr.mxu0 0.0
        %1363 = vmatpush1.msra.mxu0 0.0
        %1364 = vmatprep.subr.mxu0 0.0
        %1365 = vmatpush1.msra.mxu0 0.0
        %1366 = vmatprep.subr.mxu0 0.0
        %1367 = vmatpush1.msra.mxu0 0.0
        %1368 = vmatprep.subr.mxu0 0.0
        %1369 = vmatpush1.msra.mxu0 0.0
        %1370 = vmatprep.subr.mxu0 0.0
        %1371 = vmatpush1.msra.mxu0 0.0
        %1372 = vmatprep.subr.mxu0 0.0
        %1373 = vmatpush1.msra.mxu0 0.0
        %1374 = vmatprep.subr.mxu0 0.0
        %1375 = vmatpush1.msra.mxu0 0.0
        %1376 = vmatprep.subr.mxu0 0.0
        %1377 = vmatpush1.msra.mxu0 0.0
        %1378 = vmatprep.subr.mxu0 0.0
        %1379 = vmatpush1.msra.mxu0 0.0
        %1380 = vmatprep.subr.mxu0 0.0
        %1381 = vmatpush1.msra.mxu0 0.0
        %1382 = vmatprep.subr.mxu0 0.0
        %1383 = vmatpush1.msra.mxu0 0.0
        %1384 = vmatprep.subr.mxu0 0.0
        %1385 = vmatpush1.msra.mxu0 0.0
        %1386 = vmatprep.mubr.f32.mxu0 0.0
        %1387 = vmatmul.mubr.f32.gmra.mrb[0].mxu0 %v1320
        %v1388 = vpop.f32.mrb[0].mxu0
        %v1389 = vadd.f32 0.0, %v1388
        %v1390 = vpop.f32.mrb[0].mxu0
        %1391 = vdwg.mxu0
        %v1393 = vsel %vm520, %v1168, 0
        %1395 = vmatprep.subr.mxu0 0.0
        %1396 = vmatpush1.msra.mxu0 %v811
        %1397 = vmatprep.subr.mxu0 0.0
        %1398 = vmatpush1.msra.mxu0 0.0
        %1399 = vmatprep.subr.mxu0 0.0
        %1400 = vmatpush1.msra.mxu0 0.0
        %1401 = vmatprep.subr.mxu0 0.0
        %1402 = vmatpush1.msra.mxu0 0.0
        %1403 = vmatprep.subr.mxu0 0.0
        %1404 = vmatpush1.msra.mxu0 0.0
        %1405 = vmatprep.subr.mxu0 0.0
        %1406 = vmatpush1.msra.mxu0 0.0
        %1407 = vmatprep.subr.mxu0 0.0
        %1408 = vmatpush1.msra.mxu0 0.0
        %1409 = vmatprep.subr.mxu0 0.0
        %1410 = vmatpush1.msra.mxu0 0.0
        %1411 = vmatprep.subr.mxu0 0.0
        %1412 = vmatpush1.msra.mxu0 0.0
        %1413 = vmatprep.subr.mxu0 0.0
        %1414 = vmatpush1.msra.mxu0 0.0
        %1415 = vmatprep.subr.mxu0 0.0
        %1416 = vmatpush1.msra.mxu0 0.0
        %1417 = vmatprep.subr.mxu0 0.0
        %1418 = vmatpush1.msra.mxu0 0.0
        %1419 = vmatprep.subr.mxu0 0.0
        %1420 = vmatpush1.msra.mxu0 0.0
        %1421 = vmatprep.subr.mxu0 0.0
        %1422 = vmatpush1.msra.mxu0 0.0
        %1423 = vmatprep.subr.mxu0 0.0
        %1424 = vmatpush1.msra.mxu0 0.0
        %1425 = vmatprep.subr.mxu0 0.0
        %1426 = vmatpush1.msra.mxu0 0.0
        %1427 = vmatprep.subr.mxu0 0.0
        %1428 = vmatpush1.msra.mxu0 0.0
        %1429 = vmatprep.subr.mxu0 0.0
        %1430 = vmatpush1.msra.mxu0 0.0
        %1431 = vmatprep.subr.mxu0 0.0
        %1432 = vmatpush1.msra.mxu0 0.0
        %1433 = vmatprep.subr.mxu0 0.0
        %1434 = vmatpush1.msra.mxu0 0.0
        %1435 = vmatprep.subr.mxu0 0.0
        %1436 = vmatpush1.msra.mxu0 0.0
        %1437 = vmatprep.subr.mxu0 0.0
        %1438 = vmatpush1.msra.mxu0 0.0
        %1439 = vmatprep.subr.mxu0 0.0
        %1440 = vmatpush1.msra.mxu0 0.0
        %1441 = vmatprep.subr.mxu0 0.0
        %1442 = vmatpush1.msra.mxu0 0.0
        %1443 = vmatprep.subr.mxu0 0.0
        %1444 = vmatpush1.msra.mxu0 0.0
        %1445 = vmatprep.subr.mxu0 0.0
        %1446 = vmatpush1.msra.mxu0 0.0
        %1447 = vmatprep.subr.mxu0 0.0
        %1448 = vmatpush1.msra.mxu0 0.0
        %1449 = vmatprep.subr.mxu0 0.0
        %1450 = vmatpush1.msra.mxu0 0.0
        %1451 = vmatprep.subr.mxu0 0.0
        %1452 = vmatpush1.msra.mxu0 0.0
        %1453 = vmatprep.subr.mxu0 0.0
        %1454 = vmatpush1.msra.mxu0 0.0
        %1455 = vmatprep.subr.mxu0 0.0
        %1456 = vmatpush1.msra.mxu0 0.0
        %1457 = vmatprep.subr.mxu0 0.0
        %1458 = vmatpush1.msra.mxu0 0.0
        %1459 = vmatprep.mubr.f32.mxu0 0.0
        %1460 = vmatmul.mubr.f32.gmra.mrb[0].mxu0 %v1393
        %v1461 = vpop.f32.mrb[0].mxu0
        %v1462 = vadd.f32 0.0, %v1461
        %v1463 = vpop.f32.mrb[0].mxu0
        %1464 = vdwg.mxu0
        %v1465 = vld [vmem:[#allocation10] sm:$0xff]
        %v1466 = vld [vmem:[#allocation10 + $0x8] sm:$0xff]
        %v1467 = vld [vmem:[#allocation10 + $0x10] sm:$0xff]
        %v1468 = vld [vmem:[#allocation10 + $0x18] sm:$0xff]
        %v1470 = vsel %vm520, %v1243, 0
        %1472 = vmatprep.subr.mxu0 0.0
        %1473 = vmatpush1.msra.mxu0 %v1465
        %1474 = vmatprep.subr.mxu0 0.0
        %1475 = vmatpush1.msra.mxu0 0.0
        %1476 = vmatprep.subr.mxu0 0.0
        %1477 = vmatpush1.msra.mxu0 0.0
        %1478 = vmatprep.subr.mxu0 0.0
        %1479 = vmatpush1.msra.mxu0 0.0
        %1480 = vmatprep.subr.mxu0 0.0
        %1481 = vmatpush1.msra.mxu0 0.0
        %1482 = vmatprep.subr.mxu0 0.0
        %1483 = vmatpush1.msra.mxu0 0.0
        %1484 = vmatprep.subr.mxu0 0.0
        %1485 = vmatpush1.msra.mxu0 0.0
        %1486 = vmatprep.subr.mxu0 0.0
        %1487 = vmatpush1.msra.mxu0 0.0
        %1488 = vmatprep.subr.mxu0 0.0
        %1489 = vmatpush1.msra.mxu0 0.0
        %1490 = vmatprep.subr.mxu0 0.0
        %1491 = vmatpush1.msra.mxu0 0.0
        %1492 = vmatprep.subr.mxu0 0.0
        %1493 = vmatpush1.msra.mxu0 0.0
        %1494 = vmatprep.subr.mxu0 0.0
        %1495 = vmatpush1.msra.mxu0 0.0
        %1496 = vmatprep.subr.mxu0 0.0
        %1497 = vmatpush1.msra.mxu0 0.0
        %1498 = vmatprep.subr.mxu0 0.0
        %1499 = vmatpush1.msra.mxu0 0.0
        %1500 = vmatprep.subr.mxu0 0.0
        %1501 = vmatpush1.msra.mxu0 0.0
        %1502 = vmatprep.subr.mxu0 0.0
        %1503 = vmatpush1.msra.mxu0 0.0
        %1504 = vmatprep.subr.mxu0 0.0
        %1505 = vmatpush1.msra.mxu0 0.0
        %1506 = vmatprep.subr.mxu0 0.0
        %1507 = vmatpush1.msra.mxu0 0.0
        %1508 = vmatprep.subr.mxu0 0.0
        %1509 = vmatpush1.msra.mxu0 0.0
        %1510 = vmatprep.subr.mxu0 0.0
        %1511 = vmatpush1.msra.mxu0 0.0
        %1512 = vmatprep.subr.mxu0 0.0
        %1513 = vmatpush1.msra.mxu0 0.0
        %1514 = vmatprep.subr.mxu0 0.0
        %1515 = vmatpush1.msra.mxu0 0.0
        %1516 = vmatprep.subr.mxu0 0.0
        %1517 = vmatpush1.msra.mxu0 0.0
        %1518 = vmatprep.subr.mxu0 0.0
        %1519 = vmatpush1.msra.mxu0 0.0
        %1520 = vmatprep.subr.mxu0 0.0
        %1521 = vmatpush1.msra.mxu0 0.0
        %1522 = vmatprep.subr.mxu0 0.0
        %1523 = vmatpush1.msra.mxu0 0.0
        %1524 = vmatprep.subr.mxu0 0.0
        %1525 = vmatpush1.msra.mxu0 0.0
        %1526 = vmatprep.subr.mxu0 0.0
        %1527 = vmatpush1.msra.mxu0 0.0
        %1528 = vmatprep.subr.mxu0 0.0
        %1529 = vmatpush1.msra.mxu0 0.0
        %1530 = vmatprep.subr.mxu0 0.0
        %1531 = vmatpush1.msra.mxu0 0.0
        %1532 = vmatprep.subr.mxu0 0.0
        %1533 = vmatpush1.msra.mxu0 0.0
        %1534 = vmatprep.subr.mxu0 0.0
        %1535 = vmatpush1.msra.mxu0 0.0
        %1536 = vmatprep.mubr.f32.mxu0 0.0
        %1537 = vmatmul.mubr.f32.gmra.mrb[0].mxu0 %v1470
        %v1538 = vpop.f32.mrb[0].mxu0
        %v1539 = vadd.f32 0.0, %v1538
        %v1540 = vpop.f32.mrb[0].mxu0
        %1541 = vdwg.mxu0
        %v1543 = vsel %vm520, %v1316, 0
        %1545 = vmatprep.subr.mxu0 0.0
        %1546 = vmatpush1.msra.mxu0 %v1466
        %1547 = vmatprep.subr.mxu0 0.0
        %1548 = vmatpush1.msra.mxu0 0.0
        %1549 = vmatprep.subr.mxu0 0.0
        %1550 = vmatpush1.msra.mxu0 0.0
        %1551 = vmatprep.subr.mxu0 0.0
        %1552 = vmatpush1.msra.mxu0 0.0
        %1553 = vmatprep.subr.mxu0 0.0
        %1554 = vmatpush1.msra.mxu0 0.0
        %1555 = vmatprep.subr.mxu0 0.0
        %1556 = vmatpush1.msra.mxu0 0.0
        %1557 = vmatprep.subr.mxu0 0.0
        %1558 = vmatpush1.msra.mxu0 0.0
        %1559 = vmatprep.subr.mxu0 0.0
        %1560 = vmatpush1.msra.mxu0 0.0
        %1561 = vmatprep.subr.mxu0 0.0
        %1562 = vmatpush1.msra.mxu0 0.0
        %1563 = vmatprep.subr.mxu0 0.0
        %1564 = vmatpush1.msra.mxu0 0.0
        %1565 = vmatprep.subr.mxu0 0.0
        %1566 = vmatpush1.msra.mxu0 0.0
        %1567 = vmatprep.subr.mxu0 0.0
        %1568 = vmatpush1.msra.mxu0 0.0
        %1569 = vmatprep.subr.mxu0 0.0
        %1570 = vmatpush1.msra.mxu0 0.0
        %1571 = vmatprep.subr.mxu0 0.0
        %1572 = vmatpush1.msra.mxu0 0.0
        %1573 = vmatprep.subr.mxu0 0.0
        %1574 = vmatpush1.msra.mxu0 0.0
        %1575 = vmatprep.subr.mxu0 0.0
        %1576 = vmatpush1.msra.mxu0 0.0
        %1577 = vmatprep.subr.mxu0 0.0
        %1578 = vmatpush1.msra.mxu0 0.0
        %1579 = vmatprep.subr.mxu0 0.0
        %1580 = vmatpush1.msra.mxu0 0.0
        %1581 = vmatprep.subr.mxu0 0.0
        %1582 = vmatpush1.msra.mxu0 0.0
        %1583 = vmatprep.subr.mxu0 0.0
        %1584 = vmatpush1.msra.mxu0 0.0
        %1585 = vmatprep.subr.mxu0 0.0
        %1586 = vmatpush1.msra.mxu0 0.0
        %1587 = vmatprep.subr.mxu0 0.0
        %1588 = vmatpush1.msra.mxu0 0.0
        %1589 = vmatprep.subr.mxu0 0.0
        %1590 = vmatpush1.msra.mxu0 0.0
        %1591 = vmatprep.subr.mxu0 0.0
        %1592 = vmatpush1.msra.mxu0 0.0
        %1593 = vmatprep.subr.mxu0 0.0
        %1594 = vmatpush1.msra.mxu0 0.0
        %1595 = vmatprep.subr.mxu0 0.0
        %1596 = vmatpush1.msra.mxu0 0.0
        %1597 = vmatprep.subr.mxu0 0.0
        %1598 = vmatpush1.msra.mxu0 0.0
        %1599 = vmatprep.subr.mxu0 0.0
        %1600 = vmatpush1.msra.mxu0 0.0
        %1601 = vmatprep.subr.mxu0 0.0
        %1602 = vmatpush1.msra.mxu0 0.0
        %1603 = vmatprep.subr.mxu0 0.0
        %1604 = vmatpush1.msra.mxu0 0.0
        %1605 = vmatprep.subr.mxu0 0.0
        %1606 = vmatpush1.msra.mxu0 0.0
        %1607 = vmatprep.subr.mxu0 0.0
        %1608 = vmatpush1.msra.mxu0 0.0
        %1609 = vmatprep.mubr.f32.mxu0 0.0
        %1610 = vmatmul.mubr.f32.gmra.mrb[0].mxu0 %v1543
        %v1611 = vpop.f32.mrb[0].mxu0
        %v1612 = vadd.f32 0.0, %v1611
        %v1613 = vpop.f32.mrb[0].mxu0
        %1614 = vdwg.mxu0
        %v1616 = vsel %vm520, %v1389, 0
        %1618 = vmatprep.subr.mxu0 0.0
        %1619 = vmatpush1.msra.mxu0 %v1467
        %1620 = vmatprep.subr.mxu0 0.0
        %1621 = vmatpush1.msra.mxu0 0.0
        %1622 = vmatprep.subr.mxu0 0.0
        %1623 = vmatpush1.msra.mxu0 0.0
        %1624 = vmatprep.subr.mxu0 0.0
        %1625 = vmatpush1.msra.mxu0 0.0
        %1626 = vmatprep.subr.mxu0 0.0
        %1627 = vmatpush1.msra.mxu0 0.0
        %1628 = vmatprep.subr.mxu0 0.0
        %1629 = vmatpush1.msra.mxu0 0.0
        %1630 = vmatprep.subr.mxu0 0.0
        %1631 = vmatpush1.msra.mxu0 0.0
        %1632 = vmatprep.subr.mxu0 0.0
        %1633 = vmatpush1.msra.mxu0 0.0
        %1634 = vmatprep.subr.mxu0 0.0
        %1635 = vmatpush1.msra.mxu0 0.0
        %1636 = vmatprep.subr.mxu0 0.0
        %1637 = vmatpush1.msra.mxu0 0.0
        %1638 = vmatprep.subr.mxu0 0.0
        %1639 = vmatpush1.msra.mxu0 0.0
        %1640 = vmatprep.subr.mxu0 0.0
        %1641 = vmatpush1.msra.mxu0 0.0
        %1642 = vmatprep.subr.mxu0 0.0
        %1643 = vmatpush1.msra.mxu0 0.0
        %1644 = vmatprep.subr.mxu0 0.0
        %1645 = vmatpush1.msra.mxu0 0.0
        %1646 = vmatprep.subr.mxu0 0.0
        %1647 = vmatpush1.msra.mxu0 0.0
        %1648 = vmatprep.subr.mxu0 0.0
        %1649 = vmatpush1.msra.mxu0 0.0
        %1650 = vmatprep.subr.mxu0 0.0
        %1651 = vmatpush1.msra.mxu0 0.0
        %1652 = vmatprep.subr.mxu0 0.0
        %1653 = vmatpush1.msra.mxu0 0.0
        %1654 = vmatprep.subr.mxu0 0.0
        %1655 = vmatpush1.msra.mxu0 0.0
        %1656 = vmatprep.subr.mxu0 0.0
        %1657 = vmatpush1.msra.mxu0 0.0
        %1658 = vmatprep.subr.mxu0 0.0
        %1659 = vmatpush1.msra.mxu0 0.0
        %1660 = vmatprep.subr.mxu0 0.0
        %1661 = vmatpush1.msra.mxu0 0.0
        %1662 = vmatprep.subr.mxu0 0.0
        %1663 = vmatpush1.msra.mxu0 0.0
        %1664 = vmatprep.subr.mxu0 0.0
        %1665 = vmatpush1.msra.mxu0 0.0
        %1666 = vmatprep.subr.mxu0 0.0
        %1667 = vmatpush1.msra.mxu0 0.0
        %1668 = vmatprep.subr.mxu0 0.0
        %1669 = vmatpush1.msra.mxu0 0.0
        %1670 = vmatprep.subr.mxu0 0.0
        %1671 = vmatpush1.msra.mxu0 0.0
        %1672 = vmatprep.subr.mxu0 0.0
        %1673 = vmatpush1.msra.mxu0 0.0
        %1674 = vmatprep.subr.mxu0 0.0
        %1675 = vmatpush1.msra.mxu0 0.0
        %1676 = vmatprep.subr.mxu0 0.0
        %1677 = vmatpush1.msra.mxu0 0.0
        %1678 = vmatprep.subr.mxu0 0.0
        %1679 = vmatpush1.msra.mxu0 0.0
        %1680 = vmatprep.subr.mxu0 0.0
        %1681 = vmatpush1.msra.mxu0 0.0
        %1682 = vmatprep.mubr.f32.mxu0 0.0
        %1683 = vmatmul.mubr.f32.gmra.mrb[0].mxu0 %v1616
        %v1684 = vpop.f32.mrb[0].mxu0
        %v1685 = vadd.f32 0.0, %v1684
        %v1686 = vpop.f32.mrb[0].mxu0
        %1687 = vdwg.mxu0
        %v1689 = vsel %vm520, %v1462, 0
        %1691 = vmatprep.subr.mxu0 0.0
        %1692 = vmatpush1.msra.mxu0 %v1468
        %1693 = vmatprep.subr.mxu0 0.0
        %1694 = vmatpush1.msra.mxu0 0.0
        %1695 = vmatprep.subr.mxu0 0.0
        %1696 = vmatpush1.msra.mxu0 0.0
        %1697 = vmatprep.subr.mxu0 0.0
        %1698 = vmatpush1.msra.mxu0 0.0
        %1699 = vmatprep.subr.mxu0 0.0
        %1700 = vmatpush1.msra.mxu0 0.0
        %1701 = vmatprep.subr.mxu0 0.0
        %1702 = vmatpush1.msra.mxu0 0.0
        %1703 = vmatprep.subr.mxu0 0.0
        %1704 = vmatpush1.msra.mxu0 0.0
        %1705 = vmatprep.subr.mxu0 0.0
        %1706 = vmatpush1.msra.mxu0 0.0
        %1707 = vmatprep.subr.mxu0 0.0
        %1708 = vmatpush1.msra.mxu0 0.0
        %1709 = vmatprep.subr.mxu0 0.0
        %1710 = vmatpush1.msra.mxu0 0.0
        %1711 = vmatprep.subr.mxu0 0.0
        %1712 = vmatpush1.msra.mxu0 0.0
        %1713 = vmatprep.subr.mxu0 0.0
        %1714 = vmatpush1.msra.mxu0 0.0
        %1715 = vmatprep.subr.mxu0 0.0
        %1716 = vmatpush1.msra.mxu0 0.0
        %1717 = vmatprep.subr.mxu0 0.0
        %1718 = vmatpush1.msra.mxu0 0.0
        %1719 = vmatprep.subr.mxu0 0.0
        %1720 = vmatpush1.msra.mxu0 0.0
        %1721 = vmatprep.subr.mxu0 0.0
        %1722 = vmatpush1.msra.mxu0 0.0
        %1723 = vmatprep.subr.mxu0 0.0
        %1724 = vmatpush1.msra.mxu0 0.0
        %1725 = vmatprep.subr.mxu0 0.0
        %1726 = vmatpush1.msra.mxu0 0.0
        %1727 = vmatprep.subr.mxu0 0.0
        %1728 = vmatpush1.msra.mxu0 0.0
        %1729 = vmatprep.subr.mxu0 0.0
        %1730 = vmatpush1.msra.mxu0 0.0
        %1731 = vmatprep.subr.mxu0 0.0
        %1732 = vmatpush1.msra.mxu0 0.0
        %1733 = vmatprep.subr.mxu0 0.0
        %1734 = vmatpush1.msra.mxu0 0.0
        %1735 = vmatprep.subr.mxu0 0.0
        %1736 = vmatpush1.msra.mxu0 0.0
        %1737 = vmatprep.subr.mxu0 0.0
        %1738 = vmatpush1.msra.mxu0 0.0
        %1739 = vmatprep.subr.mxu0 0.0
        %1740 = vmatpush1.msra.mxu0 0.0
        %1741 = vmatprep.subr.mxu0 0.0
        %1742 = vmatpush1.msra.mxu0 0.0
        %1743 = vmatprep.subr.mxu0 0.0
        %1744 = vmatpush1.msra.mxu0 0.0
        %1745 = vmatprep.subr.mxu0 0.0
        %1746 = vmatpush1.msra.mxu0 0.0
        %1747 = vmatprep.subr.mxu0 0.0
        %1748 = vmatpush1.msra.mxu0 0.0
        %1749 = vmatprep.subr.mxu0 0.0
        %1750 = vmatpush1.msra.mxu0 0.0
        %1751 = vmatprep.subr.mxu0 0.0
        %1752 = vmatpush1.msra.mxu0 0.0
        %1753 = vmatprep.subr.mxu0 0.0
        %1754 = vmatpush1.msra.mxu0 0.0
        %1755 = vmatprep.mubr.f32.mxu0 0.0
        %1756 = vmatmul.mubr.f32.gmra.mrb[0].mxu0 %v1689
        %v1757 = vpop.f32.mrb[0].mxu0
        %v1758 = vadd.f32 0.0, %v1757
        %v1759 = vpop.f32.mrb[0].mxu0
        %1760 = vdwg.mxu0
        %vm1761 = vcmask 261120
        %v1762 = vsel %vm1761, %v1539, 0.0
        %v1763 = vsel %vm1761, %v1612, 0.0
        %v1764 = vadd.f32 %v1762, %v1763
        %v1765 = vsel %vm1761, %v1685, 0.0
        %v1766 = vadd.f32 %v1764, %v1765
        %v1767 = vsel %vm1761, %v1758, 0.0
        %v1768 = vadd.f32 %v1766, %v1767
        %v1769 = vld [vmem:[%s8] sm:$0x1]
        %v1771 = vlaneseq
        %v1772 = vshrl.u32 %v1771, 7
        %v1773 = vsub.s32 0, %v1772
        %v1774 = vrot.slane %v1769, %v1773
        %v1776 = vadd.f32 %v1768, %v1774
        %1777 = vst.msk [vmem:[%s496] sm:$0xff] %vm1761, %v1776
        %s1778 = sand.u32 %s252, 1
        %s1779 = scalar_lea.sflag [#allocation4], %s1778
        %s1780 = sand.u32 %s252, 1
        %s1781 = smul.addr %s1780, 8
        %s1782 = scalar_lea.vmem [#allocation11], %s1781
        %s1783 = sand.u32 %s278, 1
        %s1784 = scalar_lea.sflag [#allocation13], %s1783
        %s1785 = sand.u32 %s278, 1
        %s1786 = smul.addr %s1785, 32
        %s1787 = scalar_lea.vmem [#allocation12], %s1786
        // Predicated region
        $region77: #{tpu_custom_call.1} parent=55 // pred_check
          %p1788 = pneg %p262
        $region78: #{tpu_custom_call.1} parent=55 // pred_check_branch
          %1790 = sbr.rel (%p1788) target = $region80
        $region79: #{tpu_custom_call.1} parent=55 // pred_region
          %s1792 = ssub.s32 128, 128
          %1793 = vsyncadd %s1779, %s1792
          %s1794 = smul.addr %s35, 128
          %s1795 = scalar_lea.hbm %s9, %s1794
          %s1797 = sshll.u32 %s1782, 4
          %s1798 = int_to_ptr.vmem [resolvable:$true] %s1797
          %1800 = dma.vmem_to_hbm [thread:$0]  %s1798, 128, %s1795, %s1779
        $region80: #{tpu_custom_call.1} parent=55 // pred_fallthru
          _
        // Predicated region
        $region81: #{tpu_custom_call.1} parent=55 // pred_check
          %p1801 = pneg %p288
        $region82: #{tpu_custom_call.1} parent=55 // pred_check_branch
          %1803 = sbr.rel (%p1801) target = $region84
        $region83: #{tpu_custom_call.1} parent=55 // pred_region
          %s1805 = ssub.s32 512, 512
          %1806 = vsyncadd %s1784, %s1805
          %s1807 = smul.addr %s35, 4
          %s1808 = smul.addr %s1807, 128
          %s1809 = scalar_lea.hbm %s10, %s1808
          %s1810 = sshll.u32 %s1787, 4
          %s1811 = int_to_ptr.vmem [resolvable:$true] %s1810
          %1816 = dma.vmem_to_hbm [thread:$0]  %s1811, 512, %s1809, %s1784, 128, 128, 8
        $region84: #{tpu_custom_call.1} parent=55 // pred_fallthru
          _
      $region56: #{tpu_custom_call.1} parent=5 // pred_fallthru
        _
      %p1817 = scmp.le.s32.totalorder 2, %s30
      // Predicated region
      $region85: #{tpu_custom_call.1} parent=5 // pred_check
        %p1818 = pneg %p1817
      $region86: #{tpu_custom_call.1} parent=5 // pred_check_branch
        %1820 = sbr.rel (%p1818) target = $region88
      $region87: #{tpu_custom_call.1} parent=5 // pred_region
        %s1821 = ssub.s32 %s30, 2
        // Predicated region
        $region89: #{tpu_custom_call.1} parent=87 // pred_check
          %p1822 = pneg %p268
        $region90: #{tpu_custom_call.1} parent=87 // pred_check_branch
          %1824 = sbr.rel (%p1822) target = $region92
        $region91: #{tpu_custom_call.1} parent=87 // pred_region
          %s1825 = sand.u32 %s253, 1
          %s1826 = scalar_lea.sflag [#allocation4], %s1825
          %s1827 = sand.u32 %s253, 1
          %s1828 = smul.addr %s1827, 8
          %s1829 = scalar_lea.vmem [#allocation11], %s1828
          %1830 = dma.done %s1826, 128
        $region92: #{tpu_custom_call.1} parent=87 // pred_fallthru
          _
        // Predicated region
        $region93: #{tpu_custom_call.1} parent=87 // pred_check
          %p1831 = pneg %p294
        $region94: #{tpu_custom_call.1} parent=87 // pred_check_branch
          %1833 = sbr.rel (%p1831) target = $region96
        $region95: #{tpu_custom_call.1} parent=87 // pred_region
          %s1834 = sand.u32 %s279, 1
          %s1835 = scalar_lea.sflag [#allocation13], %s1834
          %s1836 = sand.u32 %s279, 1
          %s1837 = smul.addr %s1836, 32
          %s1838 = scalar_lea.vmem [#allocation12], %s1837
          %1839 = dma.done %s1835, 512
        $region96: #{tpu_custom_call.1} parent=87 // pred_fallthru
          _
      $region88: #{tpu_custom_call.1} parent=5 // pred_fallthru
        _
    $region6: #{tpu_custom_call.1} parent=1 // loop_footer
      %s34 = sadd.s32 1, %s30
    $region7: #{tpu_custom_call.1} parent=1 // loop_footer_branch
      %29 = sbr.rel target = $region3
    $region8: #{tpu_custom_call.1} parent=1 // loop_exit
      _
    %1840 = vsyncpa [#allocation3], 1
    %s1841 = scalar_lea.sflag [#allocation3], 1
    %1842 = vsyncpa %s1841, 1
    %1843 = vsyncpa [#allocation6], 1
    %s1844 = scalar_lea.sflag [#allocation6], 1
    %1845 = vsyncpa %s1844, 1
    %1846 = vsyncpa [#allocation9], 1
    %1847 = vsyncpa [#allocation4], 1
    %s1848 = scalar_lea.sflag [#allocation4], 1
    %1849 = vsyncpa %s1848, 1
    %1850 = vsyncpa [#allocation13], 1
    %s1851 = scalar_lea.sflag [#allocation13], 1
    %1852 = vsyncpa %s1851, 1

</llo_original>
